<compile_context>
chip_gen: v7x
topology: tpu7x:2x2x1
jax: 0.10.0
libtpu: 0.0.40
codegen_flags: <defaults>
</compile_context>

<pallas_src>
import math

import numpy as np
import jax
import jax.numpy as jnp
from jax.experimental import pallas as pl
from jax.experimental.pallas import tpu as pltpu

# ---------------- small, self-consistent config ----------------
IMG = 16            # img_size
PATCH = 8           # patch size
CIN = 3             # input channels
D = 32              # hidden_size
HEADS = 4           # num_heads
DH = D // HEADS     # head dim
LAYERS = 2          # num_layers
MLP = 4 * D         # mlp_ratio * hidden
NUM_CLASSES = 16
NP = (IMG // PATCH) ** 2          # patches per image
S = NP + 1                        # sequence length (cls token + patches)
EPS = 1e-5                        # nn.LayerNorm default eps
_GELU_C = math.sqrt(2.0 / math.pi)


# ---------------- in-kernel helpers ----------------
def _layernorm(x, w, b):
    mu = jnp.mean(x, axis=-1, keepdims=True)
    var = jnp.mean((x - mu) ** 2, axis=-1, keepdims=True)
    return (x - mu) * jax.lax.rsqrt(var + EPS) * w + b


def _gelu(x):
    # tanh-approx GELU (f32 elementwise math; see TODO above)
    return 0.5 * x * (1.0 + jnp.tanh(_GELU_C * (x + 0.044715 * x * x * x)))


def _mm(a, b):
    """a @ b on the MXU with bf16 operands and f32 accumulation."""
    return jnp.dot(a.astype(jnp.bfloat16), b.astype(jnp.bfloat16),
                   preferred_element_type=jnp.float32)


def _mm_nt(a, b):
    """a @ b.T (contract last dims) without materializing a transpose."""
    return jax.lax.dot_general(
        a.astype(jnp.bfloat16), b.astype(jnp.bfloat16),
        dimension_numbers=(((1,), (1,)), ((), ())),
        preferred_element_type=jnp.float32)


# ---------------- the single fused Pallas kernel ----------------
def vit_kernel(
    xp_ref, convw_ref, base_ref, bias_ref, hmask_ref,
    ln1w_ref, ln1b_ref, qw_ref, qb_ref, kw_ref, kb_ref, vw_ref, vb_ref,
    projw_ref, projb_ref, ln2w_ref, ln2b_ref,
    fc1w_ref, fc1b_ref, fc2w_ref, fc2b_ref,
    lnfw_ref, lnfb_ref, prew_ref, preb_ref, headw_ref, headb_ref,
    out_ref,
):
    bs_p = xp_ref.shape[0]    # padded (sublane-aligned) token-row count

    # ---- patch embedding fused with token assembly ----
    # xp already lives in padded token layout (zero rows at CLS / padding);
    # `base` = cls_token / conv bias + positional embedding (0 on padding rows).
    x = _mm(xp_ref[...], convw_ref[...]) + base_ref[...]          # (bs_p, D)

    # Constants loaded once (no per-layer / per-head re-broadcast):
    hmask = hmask_ref[...]      # (HEADS*bs_p, D)  head lane-stripe masks
    bias = bias_ref[...]        # (HEADS*bs_p, bs_p) block-diag attn bias (f32)

    for l in range(LAYERS):
        # ---- MHSA sub-block (pre-norm), batch folded into rows ----
        xn = _layernorm(x, ln1w_ref[l], ln1b_ref[l])
        q = _mm(xn, qw_ref[l]) + qb_ref[l]     # 1/sqrt(DH) folded on host
        k = _mm(xn, kw_ref[l]) + kb_ref[l]
        v = _mm(xn, vw_ref[l]) + vb_ref[l]

        # All-head scores in ONE matmul: head-stacked, lane-masked Q vs full K.
        q_stk = jnp.concatenate([q] * HEADS, axis=0) * hmask      # (H*bs_p, D)
        s = _mm_nt(q_stk, k) + bias                               # (H*bs_p, bs_p)

        # ONE softmax over the stacked heads (f32; EUP recip is ~free).
        s = s - jnp.max(s, axis=-1, keepdims=True)
        p = jnp.exp(s)
        p = p * pl.reciprocal(jnp.sum(p, axis=-1, keepdims=True), approx=True)

        # P@V per head: lane-masked V keeps each head in its own disjoint
        # DH-wide lane stripe, so the accumulating adds are exact and the
        # (bs_p, D) head output is assembled directly in vregs.
        attn = jnp.zeros_like(x)
        for h in range(HEADS):
            rows = slice(h * bs_p, (h + 1) * bs_p)   # vreg-aligned slices
            attn = attn + _mm(p[rows], v * hmask[rows])
        x = x + _mm(attn, projw_ref[l]) + projb_ref[l]

        # ---- MLP sub-block (pre-norm) ----
        xn = _layernorm(x, ln2w_ref[l], ln2b_ref[l])
        h1 = _gelu(_mm(xn, fc1w_ref[l]) + fc1b_ref[l])
        x = x + _mm(h1, fc2w_ref[l]) + fc2b_ref[l]

    # ---- final LN -> pre_logits -> tanh -> head on ALL rows (row-wise ops);
    #      CLS rows are selected in the wrapper, off the serial kernel chain.
    xf = _layernorm(x, lnfw_ref[...], lnfb_ref[...])
    z = jnp.tanh(_mm(xf, prew_ref[...]) + preb_ref[...])
    out_ref[...] = _mm(z, headw_ref[...]) + headb_ref[...]        # (bs_p, C)


# ---------------- wrapper (layout glue + one pallas_call) ----------------
@jax.jit
def vit_forward(x, params):
    B = x.shape[0]
    hp = IMG // PATCH
    K2 = CIN * PATCH * PATCH
    BS = B * S
    BS_P = ((BS + 7) // 8) * 8          # sublane-aligned token-row count
    bf16 = jnp.bfloat16

    # Patch extraction NCHW -> (B*NP, C*P*P) and scatter into the padded token
    # slab (zero rows at CLS / padding positions): the conv-as-matmul then
    # lands directly in token layout (no placement matmul in the kernel).
    patches = x.reshape(B, CIN, hp, PATCH, hp, PATCH)
    patches = patches.transpose(0, 2, 4, 1, 3, 5).reshape(B * NP, K2)
    patch_rows = np.asarray([b * S + 1 + p for b in range(B) for p in range(NP)])
    xp = jnp.zeros((BS_P, K2), jnp.float32).at[patch_rows].set(patches)

    # Token "base": cls_token (+pos) on CLS rows, conv bias (+pos) on patch
    # rows, zeros on padding rows.  One add inside the kernel.
    pos = params["pos_embed"][0]                                   # (S, D)
    cls = params["cls_token"].reshape(1, D)
    base_img = jnp.concatenate(
        [cls + pos[0:1], params["conv_b"][None, :] + pos[1:]], axis=0)   # (S, D)
    base = jnp.zeros((BS_P, D), jnp.float32).at[:BS].set(jnp.tile(base_img, (B, 1)))

    # ---- host (numpy, compile-time) constants ----
    img_id = np.full((BS_P,), -1, np.int64)
    img_id[:BS] = np.arange(BS) // S
    valid = img_id >= 0
    same = (img_id[:, None] == img_id[None, :]) & valid[:, None] & valid[None, :]
    amask = np.where(same, 0.0, -1e30).astype(np.float32)          # (BS_P, BS_P)
    bias_stk = np.tile(amask, (HEADS, 1))                          # (H*BS_P, BS_P)

    hm = np.zeros((HEADS, D), np.float32)
    for h in range(HEADS):
        hm[h, h * DH:(h + 1) * DH] = 1.0
    hmask_stk = np.repeat(hm, BS_P, axis=0)                        # (H*BS_P, D)

    # ---- parameter layout glue ----
    conv_w2 = params["conv_w"].reshape(D, K2).T.astype(bf16)       # (C*P*P, D)
    scale = DH ** -0.5
    qkv_w, qkv_b = params["qkv_w"], params["qkv_b"]
    qw = (qkv_w[:, :, 0 * D:1 * D] * scale).astype(bf16)           # scale folded
    qb = qkv_b[:, :, 0 * D:1 * D] * scale
    kw = qkv_w[:, :, 1 * D:2 * D].astype(bf16)
    kb = qkv_b[:, :, 1 * D:2 * D]
    vw = qkv_w[:, :, 2 * D:3 * D].astype(bf16)
    vb = qkv_b[:, :, 2 * D:3 * D]

    args = [
        xp, conv_w2, base, jnp.asarray(bias_stk), jnp.asarray(hmask_stk),
        params["ln1_w"], params["ln1_b"],
        qw, qb, kw, kb, vw, vb,
        params["proj_w"].astype(bf16), params["proj_b"],
        params["ln2_w"], params["ln2_b"],
        params["fc1_w"].astype(bf16), params["fc1_b"],
        params["fc2_w"].astype(bf16), params["fc2_b"],
        params["lnf_w"], params["lnf_b"],
        params["pre_w"].astype(bf16), params["pre_b"],
        params["head_w"].astype(bf16), params["head_b"],
    ]

    out_full = pl.pallas_call(
        vit_kernel,
        out_shape=jax.ShapeDtypeStruct((BS_P, NUM_CLASSES), jnp.float32),
        in_specs=[pl.BlockSpec(memory_space=pltpu.MemorySpace.VMEM)] * len(args),
        out_specs=pl.BlockSpec(memory_space=pltpu.MemorySpace.VMEM),
    )(*args)

    # CLS-token readout: rows 0, S, 2S, ... — a strided slice outside the kernel.
    return out_full[0:BS:S]


# ---------------- parameter init (mirrors the PyTorch _init) ----------------
def init_params(key):
    ks = iter(jax.random.split(key, 32))

    def tn(shape, std):
        return jax.random.truncated_normal(next(ks), -2.0, 2.0, shape, jnp.float32) * std

    p = {}
    p["conv_w"] = jax.random.normal(next(ks), (D, CIN, PATCH, PATCH), jnp.float32) * 0.02
    p["conv_b"] = jnp.zeros((D,), jnp.float32)
    p["cls_token"] = tn((1, 1, D), 0.2)
    p["pos_embed"] = jax.random.normal(next(ks), (1, S, D), jnp.float32) * 0.02
    # per-layer weights stacked along a leading LAYERS axis (static index in-kernel)
    p["ln1_w"] = jnp.ones((LAYERS, 1, D), jnp.float32)
    p["ln1_b"] = jnp.zeros((LAYERS, 1, D), jnp.float32)
    p["qkv_w"] = tn((LAYERS, D, 3 * D), 0.02)
    p["qkv_b"] = jnp.zeros((LAYERS, 1, 3 * D), jnp.float32)
    p["proj_w"] = tn((LAYERS, D, D), 0.02)
    p["proj_b"] = jnp.zeros((LAYERS, 1, D), jnp.float32)
    p["ln2_w"] = jnp.ones((LAYERS, 1, D), jnp.float32)
    p["ln2_b"] = jnp.zeros((LAYERS, 1, D), jnp.float32)
    p["fc1_w"] = tn((LAYERS, D, MLP), 0.02)
    p["fc1_b"] = jnp.zeros((LAYERS, 1, MLP), jnp.float32)
    p["fc2_w"] = tn((LAYERS, MLP, D), 0.02)
    p["fc2_b"] = jnp.zeros((LAYERS, 1, D), jnp.float32)
    p["lnf_w"] = jnp.ones((1, D), jnp.float32)
    p["lnf_b"] = jnp.zeros((1, D), jnp.float32)
    p["pre_w"] = tn((D, D), 0.02)
    p["pre_b"] = jnp.zeros((1, D), jnp.float32)
    p["head_w"] = tn((D, NUM_CLASSES), 0.02)
    p["head_b"] = jnp.zeros((1, NUM_CLASSES), jnp.float32)
    return p


if __name__ == "__main__":
    root = jax.random.PRNGKey(0)
    pkey, xkey = jax.random.split(root)
    params = init_params(pkey)
    x = jax.random.normal(xkey, (2, CIN, IMG, IMG), jnp.float32)   # NCHW like PyTorch
    out = vit_forward(x, params)
    out = jax.block_until_ready(out)
    assert out.shape == (2, NUM_CLASSES), out.shape
    assert bool(jnp.all(jnp.isfinite(out)))
    print("KERNEL_OK")
</pallas_src>

<mosaic_0001>
module attributes {stable_mosaic.version = 11 : i64} {
  func.func @vit_kernel(%arg0: memref<16x192xf32, #tpu.memory_space<vmem>>, %arg1: memref<192x32xbf16, #tpu.memory_space<vmem>>, %arg2: memref<16x32xf32, #tpu.memory_space<vmem>>, %arg3: memref<64x16xf32, #tpu.memory_space<vmem>>, %arg4: memref<64x32xf32, #tpu.memory_space<vmem>>, %arg5: memref<2x1x32xf32, #tpu.memory_space<vmem>>, %arg6: memref<2x1x32xf32, #tpu.memory_space<vmem>>, %arg7: memref<2x32x32xbf16, #tpu.memory_space<vmem>>, %arg8: memref<2x1x32xf32, #tpu.memory_space<vmem>>, %arg9: memref<2x32x32xbf16, #tpu.memory_space<vmem>>, %arg10: memref<2x1x32xf32, #tpu.memory_space<vmem>>, %arg11: memref<2x32x32xbf16, #tpu.memory_space<vmem>>, %arg12: memref<2x1x32xf32, #tpu.memory_space<vmem>>, %arg13: memref<2x32x32xbf16, #tpu.memory_space<vmem>>, %arg14: memref<2x1x32xf32, #tpu.memory_space<vmem>>, %arg15: memref<2x1x32xf32, #tpu.memory_space<vmem>>, %arg16: memref<2x1x32xf32, #tpu.memory_space<vmem>>, %arg17: memref<2x32x128xbf16, #tpu.memory_space<vmem>>, %arg18: memref<2x1x128xf32, #tpu.memory_space<vmem>>, %arg19: memref<2x128x32xbf16, #tpu.memory_space<vmem>>, %arg20: memref<2x1x32xf32, #tpu.memory_space<vmem>>, %arg21: memref<1x32xf32, #tpu.memory_space<vmem>>, %arg22: memref<1x32xf32, #tpu.memory_space<vmem>>, %arg23: memref<32x32xbf16, #tpu.memory_space<vmem>>, %arg24: memref<1x32xf32, #tpu.memory_space<vmem>>, %arg25: memref<32x16xbf16, #tpu.memory_space<vmem>>, %arg26: memref<1x16xf32, #tpu.memory_space<vmem>>, %arg27: memref<16x16xf32, #tpu.memory_space<vmem>>) attributes {dimension_semantics = [], scalar_prefetch = 0 : i64, scratch_operands = 0 : i64, tpu.core_type = #tpu.core_type<tc>} {
    %c0 = arith.constant 0 : index
    %c0_0 = arith.constant 0 : index
    %0 = vector.load %arg0[%c0, %c0_0] : memref<16x192xf32, #tpu.memory_space<vmem>>, vector<16x192xf32>
    %c0_1 = arith.constant 0 : index
    %c0_2 = arith.constant 0 : index
    %1 = vector.load %arg1[%c0_1, %c0_2] : memref<192x32xbf16, #tpu.memory_space<vmem>>, vector<192x32xbf16>
    %2 = arith.truncf %0 : vector<16x192xf32> to vector<16x192xbf16>
    %cst = arith.constant dense<0.000000e+00> : vector<16x32xf32>
    %3 = tpu.matmul %2, %1, %cst {dimension_numbers = #tpu.dot_dimension_numbers<[1], [0], [0], [1], [0, 0, 1, 1], [], []>} : vector<16x192xbf16>, vector<192x32xbf16>, vector<16x32xf32> -> vector<16x32xf32>
    %c0_3 = arith.constant 0 : index
    %c0_4 = arith.constant 0 : index
    %4 = vector.load %arg2[%c0_3, %c0_4] : memref<16x32xf32, #tpu.memory_space<vmem>>, vector<16x32xf32>
    %5 = arith.addf %3, %4 : vector<16x32xf32>
    %c0_5 = arith.constant 0 : index
    %c0_6 = arith.constant 0 : index
    %6 = vector.load %arg4[%c0_5, %c0_6] : memref<64x32xf32, #tpu.memory_space<vmem>>, vector<64x32xf32>
    %c0_7 = arith.constant 0 : index
    %c0_8 = arith.constant 0 : index
    %7 = vector.load %arg3[%c0_7, %c0_8] : memref<64x16xf32, #tpu.memory_space<vmem>>, vector<64x16xf32>
    %c0_9 = arith.constant 0 : index
    %c0_10 = arith.constant 0 : index
    %c0_11 = arith.constant 0 : index
    %8 = vector.load %arg5[%c0_9, %c0_10, %c0_11] : memref<2x1x32xf32, #tpu.memory_space<vmem>>, vector<1x1x32xf32>
    %9 = vector.shape_cast %8 : vector<1x1x32xf32> to vector<1x32xf32>
    %c0_12 = arith.constant 0 : index
    %c0_13 = arith.constant 0 : index
    %c0_14 = arith.constant 0 : index
    %10 = vector.load %arg6[%c0_12, %c0_13, %c0_14] : memref<2x1x32xf32, #tpu.memory_space<vmem>>, vector<1x1x32xf32>
    %11 = vector.shape_cast %10 : vector<1x1x32xf32> to vector<1x32xf32>
    %cst_15 = arith.constant dense<0.000000e+00> : vector<16xf32>
    %12 = vector.multi_reduction <add>, %5, %cst_15 [1] : vector<16x32xf32> to vector<16xf32>
    %13 = vector.shape_cast %12 : vector<16xf32> to vector<16x1xf32>
    %cst_16 = arith.constant 3.200000e+01 : f32
    %14 = vector.broadcast %cst_16 : f32 to vector<16x1xf32>
    %15 = arith.divf %13, %14 : vector<16x1xf32>
    %16 = vector.broadcast %15 : vector<16x1xf32> to vector<16x32xf32>
    %17 = arith.subf %5, %16 : vector<16x32xf32>
    %18 = arith.mulf %17, %17 : vector<16x32xf32>
    %cst_17 = arith.constant dense<0.000000e+00> : vector<16xf32>
    %19 = vector.multi_reduction <add>, %18, %cst_17 [1] : vector<16x32xf32> to vector<16xf32>
    %20 = vector.shape_cast %19 : vector<16xf32> to vector<16x1xf32>
    %cst_18 = arith.constant 3.200000e+01 : f32
    %21 = vector.broadcast %cst_18 : f32 to vector<16x1xf32>
    %22 = arith.divf %20, %21 : vector<16x1xf32>
    %23 = vector.broadcast %15 : vector<16x1xf32> to vector<16x32xf32>
    %24 = arith.subf %5, %23 : vector<16x32xf32>
    %cst_19 = arith.constant 9.99999974E-6 : f32
    %25 = vector.broadcast %cst_19 : f32 to vector<16x1xf32>
    %26 = arith.addf %22, %25 : vector<16x1xf32>
    %27 = math.rsqrt %26 : vector<16x1xf32>
    %28 = vector.broadcast %27 : vector<16x1xf32> to vector<16x32xf32>
    %29 = arith.mulf %24, %28 : vector<16x32xf32>
    %30 = vector.broadcast %9 : vector<1x32xf32> to vector<16x32xf32>
    %31 = arith.mulf %29, %30 : vector<16x32xf32>
    %32 = vector.broadcast %11 : vector<1x32xf32> to vector<16x32xf32>
    %33 = arith.addf %31, %32 : vector<16x32xf32>
    %c0_20 = arith.constant 0 : index
    %c0_21 = arith.constant 0 : index
    %c0_22 = arith.constant 0 : index
    %34 = vector.load %arg7[%c0_20, %c0_21, %c0_22] : memref<2x32x32xbf16, #tpu.memory_space<vmem>>, vector<1x32x32xbf16>
    %35 = vector.shape_cast %34 : vector<1x32x32xbf16> to vector<32x32xbf16>
    %36 = arith.truncf %33 : vector<16x32xf32> to vector<16x32xbf16>
    %cst_23 = arith.constant dense<0.000000e+00> : vector<16x32xf32>
    %37 = tpu.matmul %36, %35, %cst_23 {dimension_numbers = #tpu.dot_dimension_numbers<[1], [0], [0], [1], [0, 0, 1, 1], [], []>} : vector<16x32xbf16>, vector<32x32xbf16>, vector<16x32xf32> -> vector<16x32xf32>
    %c0_24 = arith.constant 0 : index
    %c0_25 = arith.constant 0 : index
    %c0_26 = arith.constant 0 : index
    %38 = vector.load %arg8[%c0_24, %c0_25, %c0_26] : memref<2x1x32xf32, #tpu.memory_space<vmem>>, vector<1x1x32xf32>
    %39 = vector.shape_cast %38 : vector<1x1x32xf32> to vector<1x32xf32>
    %40 = vector.broadcast %39 : vector<1x32xf32> to vector<16x32xf32>
    %41 = arith.addf %37, %40 : vector<16x32xf32>
    %c0_27 = arith.constant 0 : index
    %c0_28 = arith.constant 0 : index
    %c0_29 = arith.constant 0 : index
    %42 = vector.load %arg9[%c0_27, %c0_28, %c0_29] : memref<2x32x32xbf16, #tpu.memory_space<vmem>>, vector<1x32x32xbf16>
    %43 = vector.shape_cast %42 : vector<1x32x32xbf16> to vector<32x32xbf16>
    %44 = arith.truncf %33 : vector<16x32xf32> to vector<16x32xbf16>
    %cst_30 = arith.constant dense<0.000000e+00> : vector<16x32xf32>
    %45 = tpu.matmul %44, %43, %cst_30 {dimension_numbers = #tpu.dot_dimension_numbers<[1], [0], [0], [1], [0, 0, 1, 1], [], []>} : vector<16x32xbf16>, vector<32x32xbf16>, vector<16x32xf32> -> vector<16x32xf32>
    %c0_31 = arith.constant 0 : index
    %c0_32 = arith.constant 0 : index
    %c0_33 = arith.constant 0 : index
    %46 = vector.load %arg10[%c0_31, %c0_32, %c0_33] : memref<2x1x32xf32, #tpu.memory_space<vmem>>, vector<1x1x32xf32>
    %47 = vector.shape_cast %46 : vector<1x1x32xf32> to vector<1x32xf32>
    %48 = vector.broadcast %47 : vector<1x32xf32> to vector<16x32xf32>
    %49 = arith.addf %45, %48 : vector<16x32xf32>
    %c0_34 = arith.constant 0 : index
    %c0_35 = arith.constant 0 : index
    %c0_36 = arith.constant 0 : index
    %50 = vector.load %arg11[%c0_34, %c0_35, %c0_36] : memref<2x32x32xbf16, #tpu.memory_space<vmem>>, vector<1x32x32xbf16>
    %51 = vector.shape_cast %50 : vector<1x32x32xbf16> to vector<32x32xbf16>
    %52 = arith.truncf %33 : vector<16x32xf32> to vector<16x32xbf16>
    %cst_37 = arith.constant dense<0.000000e+00> : vector<16x32xf32>
    %53 = tpu.matmul %52, %51, %cst_37 {dimension_numbers = #tpu.dot_dimension_numbers<[1], [0], [0], [1], [0, 0, 1, 1], [], []>} : vector<16x32xbf16>, vector<32x32xbf16>, vector<16x32xf32> -> vector<16x32xf32>
    %c0_38 = arith.constant 0 : index
    %c0_39 = arith.constant 0 : index
    %c0_40 = arith.constant 0 : index
    %54 = vector.load %arg12[%c0_38, %c0_39, %c0_40] : memref<2x1x32xf32, #tpu.memory_space<vmem>>, vector<1x1x32xf32>
    %55 = vector.shape_cast %54 : vector<1x1x32xf32> to vector<1x32xf32>
    %56 = vector.broadcast %55 : vector<1x32xf32> to vector<16x32xf32>
    %57 = arith.addf %53, %56 : vector<16x32xf32>
    %58 = tpu.concatenate %41, %41, %41, %41 in 0 : vector<16x32xf32>, vector<16x32xf32>, vector<16x32xf32>, vector<16x32xf32> -> vector<64x32xf32>
    %59 = arith.mulf %58, %6 : vector<64x32xf32>
    %60 = arith.truncf %59 : vector<64x32xf32> to vector<64x32xbf16>
    %61 = arith.truncf %49 : vector<16x32xf32> to vector<16x32xbf16>
    %cst_41 = arith.constant dense<0.000000e+00> : vector<64x16xf32>
    %62 = tpu.matmul %60, %61, %cst_41 {dimension_numbers = #tpu.dot_dimension_numbers<[1], [1], [0], [0], [0, 0, 1, 0], [], []>} : vector<64x32xbf16>, vector<16x32xbf16>, vector<64x16xf32> -> vector<64x16xf32>
    %63 = arith.addf %62, %7 : vector<64x16xf32>
    %cst_42 = arith.constant dense<0xFF800000> : vector<64xf32>
    %64 = vector.multi_reduction <maximumf>, %63, %cst_42 [1] : vector<64x16xf32> to vector<64xf32>
    %65 = vector.shape_cast %64 : vector<64xf32> to vector<64x1xf32>
    %66 = vector.broadcast %65 : vector<64x1xf32> to vector<64x16xf32>
    %67 = arith.subf %63, %66 : vector<64x16xf32>
    %68 = math.exp %67 : vector<64x16xf32>
    %cst_43 = arith.constant dense<0.000000e+00> : vector<64xf32>
    %69 = vector.multi_reduction <add>, %68, %cst_43 [1] : vector<64x16xf32> to vector<64xf32>
    %70 = vector.shape_cast %69 : vector<64xf32> to vector<64x1xf32>
    %71 = tpu.reciprocal %70 {approx = true} : vector<64x1xf32> -> vector<64x1xf32>
    %72 = vector.broadcast %71 : vector<64x1xf32> to vector<64x16xf32>
    %73 = arith.mulf %68, %72 : vector<64x16xf32>
    %cst_44 = arith.constant 0.000000e+00 : f32
    %74 = vector.broadcast %cst_44 : f32 to vector<16x32xf32>
    %75 = vector.extract_strided_slice %73 {offsets = [0, 0], sizes = [16, 16], strides = [1, 1]} : vector<64x16xf32> to vector<16x16xf32>
    %76 = vector.extract_strided_slice %6 {offsets = [0, 0], sizes = [16, 32], strides = [1, 1]} : vector<64x32xf32> to vector<16x32xf32>
    %77 = arith.mulf %57, %76 : vector<16x32xf32>
    %78 = arith.truncf %75 : vector<16x16xf32> to vector<16x16xbf16>
    %79 = arith.truncf %77 : vector<16x32xf32> to vector<16x32xbf16>
    %cst_45 = arith.constant dense<0.000000e+00> : vector<16x32xf32>
    %80 = tpu.matmul %78, %79, %cst_45 {dimension_numbers = #tpu.dot_dimension_numbers<[1], [0], [0], [1], [0, 0, 1, 1], [], []>} : vector<16x16xbf16>, vector<16x32xbf16>, vector<16x32xf32> -> vector<16x32xf32>
    %81 = arith.addf %74, %80 : vector<16x32xf32>
    %82 = vector.extract_strided_slice %73 {offsets = [16, 0], sizes = [16, 16], strides = [1, 1]} : vector<64x16xf32> to vector<16x16xf32>
    %83 = vector.extract_strided_slice %6 {offsets = [16, 0], sizes = [16, 32], strides = [1, 1]} : vector<64x32xf32> to vector<16x32xf32>
    %84 = arith.mulf %57, %83 : vector<16x32xf32>
    %85 = arith.truncf %82 : vector<16x16xf32> to vector<16x16xbf16>
    %86 = arith.truncf %84 : vector<16x32xf32> to vector<16x32xbf16>
    %cst_46 = arith.constant dense<0.000000e+00> : vector<16x32xf32>
    %87 = tpu.matmul %85, %86, %cst_46 {dimension_numbers = #tpu.dot_dimension_numbers<[1], [0], [0], [1], [0, 0, 1, 1], [], []>} : vector<16x16xbf16>, vector<16x32xbf16>, vector<16x32xf32> -> vector<16x32xf32>
    %88 = arith.addf %81, %87 : vector<16x32xf32>
    %89 = vector.extract_strided_slice %73 {offsets = [32, 0], sizes = [16, 16], strides = [1, 1]} : vector<64x16xf32> to vector<16x16xf32>
    %90 = vector.extract_strided_slice %6 {offsets = [32, 0], sizes = [16, 32], strides = [1, 1]} : vector<64x32xf32> to vector<16x32xf32>
    %91 = arith.mulf %57, %90 : vector<16x32xf32>
    %92 = arith.truncf %89 : vector<16x16xf32> to vector<16x16xbf16>
    %93 = arith.truncf %91 : vector<16x32xf32> to vector<16x32xbf16>
    %cst_47 = arith.constant dense<0.000000e+00> : vector<16x32xf32>
    %94 = tpu.matmul %92, %93, %cst_47 {dimension_numbers = #tpu.dot_dimension_numbers<[1], [0], [0], [1], [0, 0, 1, 1], [], []>} : vector<16x16xbf16>, vector<16x32xbf16>, vector<16x32xf32> -> vector<16x32xf32>
    %95 = arith.addf %88, %94 : vector<16x32xf32>
    %96 = vector.extract_strided_slice %73 {offsets = [48, 0], sizes = [16, 16], strides = [1, 1]} : vector<64x16xf32> to vector<16x16xf32>
    %97 = vector.extract_strided_slice %6 {offsets = [48, 0], sizes = [16, 32], strides = [1, 1]} : vector<64x32xf32> to vector<16x32xf32>
    %98 = arith.mulf %57, %97 : vector<16x32xf32>
    %99 = arith.truncf %96 : vector<16x16xf32> to vector<16x16xbf16>
    %100 = arith.truncf %98 : vector<16x32xf32> to vector<16x32xbf16>
    %cst_48 = arith.constant dense<0.000000e+00> : vector<16x32xf32>
    %101 = tpu.matmul %99, %100, %cst_48 {dimension_numbers = #tpu.dot_dimension_numbers<[1], [0], [0], [1], [0, 0, 1, 1], [], []>} : vector<16x16xbf16>, vector<16x32xbf16>, vector<16x32xf32> -> vector<16x32xf32>
    %102 = arith.addf %95, %101 : vector<16x32xf32>
    %c0_49 = arith.constant 0 : index
    %c0_50 = arith.constant 0 : index
    %c0_51 = arith.constant 0 : index
    %103 = vector.load %arg13[%c0_49, %c0_50, %c0_51] : memref<2x32x32xbf16, #tpu.memory_space<vmem>>, vector<1x32x32xbf16>
    %104 = vector.shape_cast %103 : vector<1x32x32xbf16> to vector<32x32xbf16>
    %105 = arith.truncf %102 : vector<16x32xf32> to vector<16x32xbf16>
    %cst_52 = arith.constant dense<0.000000e+00> : vector<16x32xf32>
    %106 = tpu.matmul %105, %104, %cst_52 {dimension_numbers = #tpu.dot_dimension_numbers<[1], [0], [0], [1], [0, 0, 1, 1], [], []>} : vector<16x32xbf16>, vector<32x32xbf16>, vector<16x32xf32> -> vector<16x32xf32>
    %107 = arith.addf %5, %106 : vector<16x32xf32>
    %c0_53 = arith.constant 0 : index
    %c0_54 = arith.constant 0 : index
    %c0_55 = arith.constant 0 : index
    %108 = vector.load %arg14[%c0_53, %c0_54, %c0_55] : memref<2x1x32xf32, #tpu.memory_space<vmem>>, vector<1x1x32xf32>
    %109 = vector.shape_cast %108 : vector<1x1x32xf32> to vector<1x32xf32>
    %110 = vector.broadcast %109 : vector<1x32xf32> to vector<16x32xf32>
    %111 = arith.addf %107, %110 : vector<16x32xf32>
    %c0_56 = arith.constant 0 : index
    %c0_57 = arith.constant 0 : index
    %c0_58 = arith.constant 0 : index
    %112 = vector.load %arg15[%c0_56, %c0_57, %c0_58] : memref<2x1x32xf32, #tpu.memory_space<vmem>>, vector<1x1x32xf32>
    %113 = vector.shape_cast %112 : vector<1x1x32xf32> to vector<1x32xf32>
    %c0_59 = arith.constant 0 : index
    %c0_60 = arith.constant 0 : index
    %c0_61 = arith.constant 0 : index
    %114 = vector.load %arg16[%c0_59, %c0_60, %c0_61] : memref<2x1x32xf32, #tpu.memory_space<vmem>>, vector<1x1x32xf32>
    %115 = vector.shape_cast %114 : vector<1x1x32xf32> to vector<1x32xf32>
    %cst_62 = arith.constant dense<0.000000e+00> : vector<16xf32>
    %116 = vector.multi_reduction <add>, %111, %cst_62 [1] : vector<16x32xf32> to vector<16xf32>
    %117 = vector.shape_cast %116 : vector<16xf32> to vector<16x1xf32>
    %cst_63 = arith.constant 3.200000e+01 : f32
    %118 = vector.broadcast %cst_63 : f32 to vector<16x1xf32>
    %119 = arith.divf %117, %118 : vector<16x1xf32>
    %120 = vector.broadcast %119 : vector<16x1xf32> to vector<16x32xf32>
    %121 = arith.subf %111, %120 : vector<16x32xf32>
    %122 = arith.mulf %121, %121 : vector<16x32xf32>
    %cst_64 = arith.constant dense<0.000000e+00> : vector<16xf32>
    %123 = vector.multi_reduction <add>, %122, %cst_64 [1] : vector<16x32xf32> to vector<16xf32>
    %124 = vector.shape_cast %123 : vector<16xf32> to vector<16x1xf32>
    %cst_65 = arith.constant 3.200000e+01 : f32
    %125 = vector.broadcast %cst_65 : f32 to vector<16x1xf32>
    %126 = arith.divf %124, %125 : vector<16x1xf32>
    %127 = vector.broadcast %119 : vector<16x1xf32> to vector<16x32xf32>
    %128 = arith.subf %111, %127 : vector<16x32xf32>
    %cst_66 = arith.constant 9.99999974E-6 : f32
    %129 = vector.broadcast %cst_66 : f32 to vector<16x1xf32>
    %130 = arith.addf %126, %129 : vector<16x1xf32>
    %131 = math.rsqrt %130 : vector<16x1xf32>
    %132 = vector.broadcast %131 : vector<16x1xf32> to vector<16x32xf32>
    %133 = arith.mulf %128, %132 : vector<16x32xf32>
    %134 = vector.broadcast %113 : vector<1x32xf32> to vector<16x32xf32>
    %135 = arith.mulf %133, %134 : vector<16x32xf32>
    %136 = vector.broadcast %115 : vector<1x32xf32> to vector<16x32xf32>
    %137 = arith.addf %135, %136 : vector<16x32xf32>
    %c0_67 = arith.constant 0 : index
    %c0_68 = arith.constant 0 : index
    %c0_69 = arith.constant 0 : index
    %138 = vector.load %arg17[%c0_67, %c0_68, %c0_69] : memref<2x32x128xbf16, #tpu.memory_space<vmem>>, vector<1x32x128xbf16>
    %139 = vector.shape_cast %138 : vector<1x32x128xbf16> to vector<32x128xbf16>
    %140 = arith.truncf %137 : vector<16x32xf32> to vector<16x32xbf16>
    %cst_70 = arith.constant dense<0.000000e+00> : vector<16x128xf32>
    %141 = tpu.matmul %140, %139, %cst_70 {dimension_numbers = #tpu.dot_dimension_numbers<[1], [0], [0], [1], [0, 0, 1, 1], [], []>} : vector<16x32xbf16>, vector<32x128xbf16>, vector<16x128xf32> -> vector<16x128xf32>
    %c0_71 = arith.constant 0 : index
    %c0_72 = arith.constant 0 : index
    %c0_73 = arith.constant 0 : index
    %142 = vector.load %arg18[%c0_71, %c0_72, %c0_73] : memref<2x1x128xf32, #tpu.memory_space<vmem>>, vector<1x1x128xf32>
    %143 = vector.shape_cast %142 : vector<1x1x128xf32> to vector<1x128xf32>
    %144 = vector.broadcast %143 : vector<1x128xf32> to vector<16x128xf32>
    %145 = arith.addf %141, %144 : vector<16x128xf32>
    %cst_74 = arith.constant 5.000000e-01 : f32
    %146 = vector.broadcast %cst_74 : f32 to vector<16x128xf32>
    %147 = arith.mulf %146, %145 : vector<16x128xf32>
    %cst_75 = arith.constant 4.471500e-02 : f32
    %148 = vector.broadcast %cst_75 : f32 to vector<16x128xf32>
    %149 = arith.mulf %148, %145 : vector<16x128xf32>
    %150 = arith.mulf %149, %145 : vector<16x128xf32>
    %151 = arith.mulf %150, %145 : vector<16x128xf32>
    %152 = arith.addf %145, %151 : vector<16x128xf32>
    %cst_76 = arith.constant 0.797884583 : f32
    %153 = vector.broadcast %cst_76 : f32 to vector<16x128xf32>
    %154 = arith.mulf %153, %152 : vector<16x128xf32>
    %155 = math.tanh %154 : vector<16x128xf32>
    %cst_77 = arith.constant 1.000000e+00 : f32
    %156 = vector.broadcast %cst_77 : f32 to vector<16x128xf32>
    %157 = arith.addf %156, %155 : vector<16x128xf32>
    %158 = arith.mulf %147, %157 : vector<16x128xf32>
    %c0_78 = arith.constant 0 : index
    %c0_79 = arith.constant 0 : index
    %c0_80 = arith.constant 0 : index
    %159 = vector.load %arg19[%c0_78, %c0_79, %c0_80] : memref<2x128x32xbf16, #tpu.memory_space<vmem>>, vector<1x128x32xbf16>
    %160 = vector.shape_cast %159 : vector<1x128x32xbf16> to vector<128x32xbf16>
    %161 = arith.truncf %158 : vector<16x128xf32> to vector<16x128xbf16>
    %cst_81 = arith.constant dense<0.000000e+00> : vector<16x32xf32>
    %162 = tpu.matmul %161, %160, %cst_81 {dimension_numbers = #tpu.dot_dimension_numbers<[1], [0], [0], [1], [0, 0, 1, 1], [], []>} : vector<16x128xbf16>, vector<128x32xbf16>, vector<16x32xf32> -> vector<16x32xf32>
    %163 = arith.addf %111, %162 : vector<16x32xf32>
    %c0_82 = arith.constant 0 : index
    %c0_83 = arith.constant 0 : index
    %c0_84 = arith.constant 0 : index
    %164 = vector.load %arg20[%c0_82, %c0_83, %c0_84] : memref<2x1x32xf32, #tpu.memory_space<vmem>>, vector<1x1x32xf32>
    %165 = vector.shape_cast %164 : vector<1x1x32xf32> to vector<1x32xf32>
    %166 = vector.broadcast %165 : vector<1x32xf32> to vector<16x32xf32>
    %167 = arith.addf %163, %166 : vector<16x32xf32>
    %c1 = arith.constant 1 : index
    %c0_85 = arith.constant 0 : index
    %c0_86 = arith.constant 0 : index
    %168 = vector.load %arg5[%c1, %c0_85, %c0_86] : memref<2x1x32xf32, #tpu.memory_space<vmem>>, vector<1x1x32xf32>
    %169 = vector.shape_cast %168 : vector<1x1x32xf32> to vector<1x32xf32>
    %c1_87 = arith.constant 1 : index
    %c0_88 = arith.constant 0 : index
    %c0_89 = arith.constant 0 : index
    %170 = vector.load %arg6[%c1_87, %c0_88, %c0_89] : memref<2x1x32xf32, #tpu.memory_space<vmem>>, vector<1x1x32xf32>
    %171 = vector.shape_cast %170 : vector<1x1x32xf32> to vector<1x32xf32>
    %cst_90 = arith.constant dense<0.000000e+00> : vector<16xf32>
    %172 = vector.multi_reduction <add>, %167, %cst_90 [1] : vector<16x32xf32> to vector<16xf32>
    %173 = vector.shape_cast %172 : vector<16xf32> to vector<16x1xf32>
    %cst_91 = arith.constant 3.200000e+01 : f32
    %174 = vector.broadcast %cst_91 : f32 to vector<16x1xf32>
    %175 = arith.divf %173, %174 : vector<16x1xf32>
    %176 = vector.broadcast %175 : vector<16x1xf32> to vector<16x32xf32>
    %177 = arith.subf %167, %176 : vector<16x32xf32>
    %178 = arith.mulf %177, %177 : vector<16x32xf32>
    %cst_92 = arith.constant dense<0.000000e+00> : vector<16xf32>
    %179 = vector.multi_reduction <add>, %178, %cst_92 [1] : vector<16x32xf32> to vector<16xf32>
    %180 = vector.shape_cast %179 : vector<16xf32> to vector<16x1xf32>
    %cst_93 = arith.constant 3.200000e+01 : f32
    %181 = vector.broadcast %cst_93 : f32 to vector<16x1xf32>
    %182 = arith.divf %180, %181 : vector<16x1xf32>
    %183 = vector.broadcast %175 : vector<16x1xf32> to vector<16x32xf32>
    %184 = arith.subf %167, %183 : vector<16x32xf32>
    %cst_94 = arith.constant 9.99999974E-6 : f32
    %185 = vector.broadcast %cst_94 : f32 to vector<16x1xf32>
    %186 = arith.addf %182, %185 : vector<16x1xf32>
    %187 = math.rsqrt %186 : vector<16x1xf32>
    %188 = vector.broadcast %187 : vector<16x1xf32> to vector<16x32xf32>
    %189 = arith.mulf %184, %188 : vector<16x32xf32>
    %190 = vector.broadcast %169 : vector<1x32xf32> to vector<16x32xf32>
    %191 = arith.mulf %189, %190 : vector<16x32xf32>
    %192 = vector.broadcast %171 : vector<1x32xf32> to vector<16x32xf32>
    %193 = arith.addf %191, %192 : vector<16x32xf32>
    %c1_95 = arith.constant 1 : index
    %c0_96 = arith.constant 0 : index
    %c0_97 = arith.constant 0 : index
    %194 = vector.load %arg7[%c1_95, %c0_96, %c0_97] : memref<2x32x32xbf16, #tpu.memory_space<vmem>>, vector<1x32x32xbf16>
    %195 = vector.shape_cast %194 : vector<1x32x32xbf16> to vector<32x32xbf16>
    %196 = arith.truncf %193 : vector<16x32xf32> to vector<16x32xbf16>
    %cst_98 = arith.constant dense<0.000000e+00> : vector<16x32xf32>
    %197 = tpu.matmul %196, %195, %cst_98 {dimension_numbers = #tpu.dot_dimension_numbers<[1], [0], [0], [1], [0, 0, 1, 1], [], []>} : vector<16x32xbf16>, vector<32x32xbf16>, vector<16x32xf32> -> vector<16x32xf32>
    %c1_99 = arith.constant 1 : index
    %c0_100 = arith.constant 0 : index
    %c0_101 = arith.constant 0 : index
    %198 = vector.load %arg8[%c1_99, %c0_100, %c0_101] : memref<2x1x32xf32, #tpu.memory_space<vmem>>, vector<1x1x32xf32>
    %199 = vector.shape_cast %198 : vector<1x1x32xf32> to vector<1x32xf32>
    %200 = vector.broadcast %199 : vector<1x32xf32> to vector<16x32xf32>
    %201 = arith.addf %197, %200 : vector<16x32xf32>
    %c1_102 = arith.constant 1 : index
    %c0_103 = arith.constant 0 : index
    %c0_104 = arith.constant 0 : index
    %202 = vector.load %arg9[%c1_102, %c0_103, %c0_104] : memref<2x32x32xbf16, #tpu.memory_space<vmem>>, vector<1x32x32xbf16>
    %203 = vector.shape_cast %202 : vector<1x32x32xbf16> to vector<32x32xbf16>
    %204 = arith.truncf %193 : vector<16x32xf32> to vector<16x32xbf16>
    %cst_105 = arith.constant dense<0.000000e+00> : vector<16x32xf32>
    %205 = tpu.matmul %204, %203, %cst_105 {dimension_numbers = #tpu.dot_dimension_numbers<[1], [0], [0], [1], [0, 0, 1, 1], [], []>} : vector<16x32xbf16>, vector<32x32xbf16>, vector<16x32xf32> -> vector<16x32xf32>
    %c1_106 = arith.constant 1 : index
    %c0_107 = arith.constant 0 : index
    %c0_108 = arith.constant 0 : index
    %206 = vector.load %arg10[%c1_106, %c0_107, %c0_108] : memref<2x1x32xf32, #tpu.memory_space<vmem>>, vector<1x1x32xf32>
    %207 = vector.shape_cast %206 : vector<1x1x32xf32> to vector<1x32xf32>
    %208 = vector.broadcast %207 : vector<1x32xf32> to vector<16x32xf32>
    %209 = arith.addf %205, %208 : vector<16x32xf32>
    %c1_109 = arith.constant 1 : index
    %c0_110 = arith.constant 0 : index
    %c0_111 = arith.constant 0 : index
    %210 = vector.load %arg11[%c1_109, %c0_110, %c0_111] : memref<2x32x32xbf16, #tpu.memory_space<vmem>>, vector<1x32x32xbf16>
    %211 = vector.shape_cast %210 : vector<1x32x32xbf16> to vector<32x32xbf16>
    %212 = arith.truncf %193 : vector<16x32xf32> to vector<16x32xbf16>
    %cst_112 = arith.constant dense<0.000000e+00> : vector<16x32xf32>
    %213 = tpu.matmul %212, %211, %cst_112 {dimension_numbers = #tpu.dot_dimension_numbers<[1], [0], [0], [1], [0, 0, 1, 1], [], []>} : vector<16x32xbf16>, vector<32x32xbf16>, vector<16x32xf32> -> vector<16x32xf32>
    %c1_113 = arith.constant 1 : index
    %c0_114 = arith.constant 0 : index
    %c0_115 = arith.constant 0 : index
    %214 = vector.load %arg12[%c1_113, %c0_114, %c0_115] : memref<2x1x32xf32, #tpu.memory_space<vmem>>, vector<1x1x32xf32>
    %215 = vector.shape_cast %214 : vector<1x1x32xf32> to vector<1x32xf32>
    %216 = vector.broadcast %215 : vector<1x32xf32> to vector<16x32xf32>
    %217 = arith.addf %213, %216 : vector<16x32xf32>
    %218 = tpu.concatenate %201, %201, %201, %201 in 0 : vector<16x32xf32>, vector<16x32xf32>, vector<16x32xf32>, vector<16x32xf32> -> vector<64x32xf32>
    %219 = arith.mulf %218, %6 : vector<64x32xf32>
    %220 = arith.truncf %219 : vector<64x32xf32> to vector<64x32xbf16>
    %221 = arith.truncf %209 : vector<16x32xf32> to vector<16x32xbf16>
    %cst_116 = arith.constant dense<0.000000e+00> : vector<64x16xf32>
    %222 = tpu.matmul %220, %221, %cst_116 {dimension_numbers = #tpu.dot_dimension_numbers<[1], [1], [0], [0], [0, 0, 1, 0], [], []>} : vector<64x32xbf16>, vector<16x32xbf16>, vector<64x16xf32> -> vector<64x16xf32>
    %223 = arith.addf %222, %7 : vector<64x16xf32>
    %cst_117 = arith.constant dense<0xFF800000> : vector<64xf32>
    %224 = vector.multi_reduction <maximumf>, %223, %cst_117 [1] : vector<64x16xf32> to vector<64xf32>
    %225 = vector.shape_cast %224 : vector<64xf32> to vector<64x1xf32>
    %226 = vector.broadcast %225 : vector<64x1xf32> to vector<64x16xf32>
    %227 = arith.subf %223, %226 : vector<64x16xf32>
    %228 = math.exp %227 : vector<64x16xf32>
    %cst_118 = arith.constant dense<0.000000e+00> : vector<64xf32>
    %229 = vector.multi_reduction <add>, %228, %cst_118 [1] : vector<64x16xf32> to vector<64xf32>
    %230 = vector.shape_cast %229 : vector<64xf32> to vector<64x1xf32>
    %231 = tpu.reciprocal %230 {approx = true} : vector<64x1xf32> -> vector<64x1xf32>
    %232 = vector.broadcast %231 : vector<64x1xf32> to vector<64x16xf32>
    %233 = arith.mulf %228, %232 : vector<64x16xf32>
    %cst_119 = arith.constant 0.000000e+00 : f32
    %234 = vector.broadcast %cst_119 : f32 to vector<16x32xf32>
    %235 = vector.extract_strided_slice %233 {offsets = [0, 0], sizes = [16, 16], strides = [1, 1]} : vector<64x16xf32> to vector<16x16xf32>
    %236 = vector.extract_strided_slice %6 {offsets = [0, 0], sizes = [16, 32], strides = [1, 1]} : vector<64x32xf32> to vector<16x32xf32>
    %237 = arith.mulf %217, %236 : vector<16x32xf32>
    %238 = arith.truncf %235 : vector<16x16xf32> to vector<16x16xbf16>
    %239 = arith.truncf %237 : vector<16x32xf32> to vector<16x32xbf16>
    %cst_120 = arith.constant dense<0.000000e+00> : vector<16x32xf32>
    %240 = tpu.matmul %238, %239, %cst_120 {dimension_numbers = #tpu.dot_dimension_numbers<[1], [0], [0], [1], [0, 0, 1, 1], [], []>} : vector<16x16xbf16>, vector<16x32xbf16>, vector<16x32xf32> -> vector<16x32xf32>
    %241 = arith.addf %234, %240 : vector<16x32xf32>
    %242 = vector.extract_strided_slice %233 {offsets = [16, 0], sizes = [16, 16], strides = [1, 1]} : vector<64x16xf32> to vector<16x16xf32>
    %243 = vector.extract_strided_slice %6 {offsets = [16, 0], sizes = [16, 32], strides = [1, 1]} : vector<64x32xf32> to vector<16x32xf32>
    %244 = arith.mulf %217, %243 : vector<16x32xf32>
    %245 = arith.truncf %242 : vector<16x16xf32> to vector<16x16xbf16>
    %246 = arith.truncf %244 : vector<16x32xf32> to vector<16x32xbf16>
    %cst_121 = arith.constant dense<0.000000e+00> : vector<16x32xf32>
    %247 = tpu.matmul %245, %246, %cst_121 {dimension_numbers = #tpu.dot_dimension_numbers<[1], [0], [0], [1], [0, 0, 1, 1], [], []>} : vector<16x16xbf16>, vector<16x32xbf16>, vector<16x32xf32> -> vector<16x32xf32>
    %248 = arith.addf %241, %247 : vector<16x32xf32>
    %249 = vector.extract_strided_slice %233 {offsets = [32, 0], sizes = [16, 16], strides = [1, 1]} : vector<64x16xf32> to vector<16x16xf32>
    %250 = vector.extract_strided_slice %6 {offsets = [32, 0], sizes = [16, 32], strides = [1, 1]} : vector<64x32xf32> to vector<16x32xf32>
    %251 = arith.mulf %217, %250 : vector<16x32xf32>
    %252 = arith.truncf %249 : vector<16x16xf32> to vector<16x16xbf16>
    %253 = arith.truncf %251 : vector<16x32xf32> to vector<16x32xbf16>
    %cst_122 = arith.constant dense<0.000000e+00> : vector<16x32xf32>
    %254 = tpu.matmul %252, %253, %cst_122 {dimension_numbers = #tpu.dot_dimension_numbers<[1], [0], [0], [1], [0, 0, 1, 1], [], []>} : vector<16x16xbf16>, vector<16x32xbf16>, vector<16x32xf32> -> vector<16x32xf32>
    %255 = arith.addf %248, %254 : vector<16x32xf32>
    %256 = vector.extract_strided_slice %233 {offsets = [48, 0], sizes = [16, 16], strides = [1, 1]} : vector<64x16xf32> to vector<16x16xf32>
    %257 = vector.extract_strided_slice %6 {offsets = [48, 0], sizes = [16, 32], strides = [1, 1]} : vector<64x32xf32> to vector<16x32xf32>
    %258 = arith.mulf %217, %257 : vector<16x32xf32>
    %259 = arith.truncf %256 : vector<16x16xf32> to vector<16x16xbf16>
    %260 = arith.truncf %258 : vector<16x32xf32> to vector<16x32xbf16>
    %cst_123 = arith.constant dense<0.000000e+00> : vector<16x32xf32>
    %261 = tpu.matmul %259, %260, %cst_123 {dimension_numbers = #tpu.dot_dimension_numbers<[1], [0], [0], [1], [0, 0, 1, 1], [], []>} : vector<16x16xbf16>, vector<16x32xbf16>, vector<16x32xf32> -> vector<16x32xf32>
    %262 = arith.addf %255, %261 : vector<16x32xf32>
    %c1_124 = arith.constant 1 : index
    %c0_125 = arith.constant 0 : index
    %c0_126 = arith.constant 0 : index
    %263 = vector.load %arg13[%c1_124, %c0_125, %c0_126] : memref<2x32x32xbf16, #tpu.memory_space<vmem>>, vector<1x32x32xbf16>
    %264 = vector.shape_cast %263 : vector<1x32x32xbf16> to vector<32x32xbf16>
    %265 = arith.truncf %262 : vector<16x32xf32> to vector<16x32xbf16>
    %cst_127 = arith.constant dense<0.000000e+00> : vector<16x32xf32>
    %266 = tpu.matmul %265, %264, %cst_127 {dimension_numbers = #tpu.dot_dimension_numbers<[1], [0], [0], [1], [0, 0, 1, 1], [], []>} : vector<16x32xbf16>, vector<32x32xbf16>, vector<16x32xf32> -> vector<16x32xf32>
    %267 = arith.addf %167, %266 : vector<16x32xf32>
    %c1_128 = arith.constant 1 : index
    %c0_129 = arith.constant 0 : index
    %c0_130 = arith.constant 0 : index
    %268 = vector.load %arg14[%c1_128, %c0_129, %c0_130] : memref<2x1x32xf32, #tpu.memory_space<vmem>>, vector<1x1x32xf32>
    %269 = vector.shape_cast %268 : vector<1x1x32xf32> to vector<1x32xf32>
    %270 = vector.broadcast %269 : vector<1x32xf32> to vector<16x32xf32>
    %271 = arith.addf %267, %270 : vector<16x32xf32>
    %c1_131 = arith.constant 1 : index
    %c0_132 = arith.constant 0 : index
    %c0_133 = arith.constant 0 : index
    %272 = vector.load %arg15[%c1_131, %c0_132, %c0_133] : memref<2x1x32xf32, #tpu.memory_space<vmem>>, vector<1x1x32xf32>
    %273 = vector.shape_cast %272 : vector<1x1x32xf32> to vector<1x32xf32>
    %c1_134 = arith.constant 1 : index
    %c0_135 = arith.constant 0 : index
    %c0_136 = arith.constant 0 : index
    %274 = vector.load %arg16[%c1_134, %c0_135, %c0_136] : memref<2x1x32xf32, #tpu.memory_space<vmem>>, vector<1x1x32xf32>
    %275 = vector.shape_cast %274 : vector<1x1x32xf32> to vector<1x32xf32>
    %cst_137 = arith.constant dense<0.000000e+00> : vector<16xf32>
    %276 = vector.multi_reduction <add>, %271, %cst_137 [1] : vector<16x32xf32> to vector<16xf32>
    %277 = vector.shape_cast %276 : vector<16xf32> to vector<16x1xf32>
    %cst_138 = arith.constant 3.200000e+01 : f32
    %278 = vector.broadcast %cst_138 : f32 to vector<16x1xf32>
    %279 = arith.divf %277, %278 : vector<16x1xf32>
    %280 = vector.broadcast %279 : vector<16x1xf32> to vector<16x32xf32>
    %281 = arith.subf %271, %280 : vector<16x32xf32>
    %282 = arith.mulf %281, %281 : vector<16x32xf32>
    %cst_139 = arith.constant dense<0.000000e+00> : vector<16xf32>
    %283 = vector.multi_reduction <add>, %282, %cst_139 [1] : vector<16x32xf32> to vector<16xf32>
    %284 = vector.shape_cast %283 : vector<16xf32> to vector<16x1xf32>
    %cst_140 = arith.constant 3.200000e+01 : f32
    %285 = vector.broadcast %cst_140 : f32 to vector<16x1xf32>
    %286 = arith.divf %284, %285 : vector<16x1xf32>
    %287 = vector.broadcast %279 : vector<16x1xf32> to vector<16x32xf32>
    %288 = arith.subf %271, %287 : vector<16x32xf32>
    %cst_141 = arith.constant 9.99999974E-6 : f32
    %289 = vector.broadcast %cst_141 : f32 to vector<16x1xf32>
    %290 = arith.addf %286, %289 : vector<16x1xf32>
    %291 = math.rsqrt %290 : vector<16x1xf32>
    %292 = vector.broadcast %291 : vector<16x1xf32> to vector<16x32xf32>
    %293 = arith.mulf %288, %292 : vector<16x32xf32>
    %294 = vector.broadcast %273 : vector<1x32xf32> to vector<16x32xf32>
    %295 = arith.mulf %293, %294 : vector<16x32xf32>
    %296 = vector.broadcast %275 : vector<1x32xf32> to vector<16x32xf32>
    %297 = arith.addf %295, %296 : vector<16x32xf32>
    %c1_142 = arith.constant 1 : index
    %c0_143 = arith.constant 0 : index
    %c0_144 = arith.constant 0 : index
    %298 = vector.load %arg17[%c1_142, %c0_143, %c0_144] : memref<2x32x128xbf16, #tpu.memory_space<vmem>>, vector<1x32x128xbf16>
    %299 = vector.shape_cast %298 : vector<1x32x128xbf16> to vector<32x128xbf16>
    %300 = arith.truncf %297 : vector<16x32xf32> to vector<16x32xbf16>
    %cst_145 = arith.constant dense<0.000000e+00> : vector<16x128xf32>
    %301 = tpu.matmul %300, %299, %cst_145 {dimension_numbers = #tpu.dot_dimension_numbers<[1], [0], [0], [1], [0, 0, 1, 1], [], []>} : vector<16x32xbf16>, vector<32x128xbf16>, vector<16x128xf32> -> vector<16x128xf32>
    %c1_146 = arith.constant 1 : index
    %c0_147 = arith.constant 0 : index
    %c0_148 = arith.constant 0 : index
    %302 = vector.load %arg18[%c1_146, %c0_147, %c0_148] : memref<2x1x128xf32, #tpu.memory_space<vmem>>, vector<1x1x128xf32>
    %303 = vector.shape_cast %302 : vector<1x1x128xf32> to vector<1x128xf32>
    %304 = vector.broadcast %303 : vector<1x128xf32> to vector<16x128xf32>
    %305 = arith.addf %301, %304 : vector<16x128xf32>
    %cst_149 = arith.constant 5.000000e-01 : f32
    %306 = vector.broadcast %cst_149 : f32 to vector<16x128xf32>
    %307 = arith.mulf %306, %305 : vector<16x128xf32>
    %cst_150 = arith.constant 4.471500e-02 : f32
    %308 = vector.broadcast %cst_150 : f32 to vector<16x128xf32>
    %309 = arith.mulf %308, %305 : vector<16x128xf32>
    %310 = arith.mulf %309, %305 : vector<16x128xf32>
    %311 = arith.mulf %310, %305 : vector<16x128xf32>
    %312 = arith.addf %305, %311 : vector<16x128xf32>
    %cst_151 = arith.constant 0.797884583 : f32
    %313 = vector.broadcast %cst_151 : f32 to vector<16x128xf32>
    %314 = arith.mulf %313, %312 : vector<16x128xf32>
    %315 = math.tanh %314 : vector<16x128xf32>
    %cst_152 = arith.constant 1.000000e+00 : f32
    %316 = vector.broadcast %cst_152 : f32 to vector<16x128xf32>
    %317 = arith.addf %316, %315 : vector<16x128xf32>
    %318 = arith.mulf %307, %317 : vector<16x128xf32>
    %c1_153 = arith.constant 1 : index
    %c0_154 = arith.constant 0 : index
    %c0_155 = arith.constant 0 : index
    %319 = vector.load %arg19[%c1_153, %c0_154, %c0_155] : memref<2x128x32xbf16, #tpu.memory_space<vmem>>, vector<1x128x32xbf16>
    %320 = vector.shape_cast %319 : vector<1x128x32xbf16> to vector<128x32xbf16>
    %321 = arith.truncf %318 : vector<16x128xf32> to vector<16x128xbf16>
    %cst_156 = arith.constant dense<0.000000e+00> : vector<16x32xf32>
    %322 = tpu.matmul %321, %320, %cst_156 {dimension_numbers = #tpu.dot_dimension_numbers<[1], [0], [0], [1], [0, 0, 1, 1], [], []>} : vector<16x128xbf16>, vector<128x32xbf16>, vector<16x32xf32> -> vector<16x32xf32>
    %323 = arith.addf %271, %322 : vector<16x32xf32>
    %c1_157 = arith.constant 1 : index
    %c0_158 = arith.constant 0 : index
    %c0_159 = arith.constant 0 : index
    %324 = vector.load %arg20[%c1_157, %c0_158, %c0_159] : memref<2x1x32xf32, #tpu.memory_space<vmem>>, vector<1x1x32xf32>
    %325 = vector.shape_cast %324 : vector<1x1x32xf32> to vector<1x32xf32>
    %326 = vector.broadcast %325 : vector<1x32xf32> to vector<16x32xf32>
    %327 = arith.addf %323, %326 : vector<16x32xf32>
    %c0_160 = arith.constant 0 : index
    %c0_161 = arith.constant 0 : index
    %328 = vector.load %arg21[%c0_160, %c0_161] : memref<1x32xf32, #tpu.memory_space<vmem>>, vector<1x32xf32>
    %c0_162 = arith.constant 0 : index
    %c0_163 = arith.constant 0 : index
    %329 = vector.load %arg22[%c0_162, %c0_163] : memref<1x32xf32, #tpu.memory_space<vmem>>, vector<1x32xf32>
    %cst_164 = arith.constant dense<0.000000e+00> : vector<16xf32>
    %330 = vector.multi_reduction <add>, %327, %cst_164 [1] : vector<16x32xf32> to vector<16xf32>
    %331 = vector.shape_cast %330 : vector<16xf32> to vector<16x1xf32>
    %cst_165 = arith.constant 3.200000e+01 : f32
    %332 = vector.broadcast %cst_165 : f32 to vector<16x1xf32>
    %333 = arith.divf %331, %332 : vector<16x1xf32>
    %334 = vector.broadcast %333 : vector<16x1xf32> to vector<16x32xf32>
    %335 = arith.subf %327, %334 : vector<16x32xf32>
    %336 = arith.mulf %335, %335 : vector<16x32xf32>
    %cst_166 = arith.constant dense<0.000000e+00> : vector<16xf32>
    %337 = vector.multi_reduction <add>, %336, %cst_166 [1] : vector<16x32xf32> to vector<16xf32>
    %338 = vector.shape_cast %337 : vector<16xf32> to vector<16x1xf32>
    %cst_167 = arith.constant 3.200000e+01 : f32
    %339 = vector.broadcast %cst_167 : f32 to vector<16x1xf32>
    %340 = arith.divf %338, %339 : vector<16x1xf32>
    %341 = vector.broadcast %333 : vector<16x1xf32> to vector<16x32xf32>
    %342 = arith.subf %327, %341 : vector<16x32xf32>
    %cst_168 = arith.constant 9.99999974E-6 : f32
    %343 = vector.broadcast %cst_168 : f32 to vector<16x1xf32>
    %344 = arith.addf %340, %343 : vector<16x1xf32>
    %345 = math.rsqrt %344 : vector<16x1xf32>
    %346 = vector.broadcast %345 : vector<16x1xf32> to vector<16x32xf32>
    %347 = arith.mulf %342, %346 : vector<16x32xf32>
    %348 = vector.broadcast %328 : vector<1x32xf32> to vector<16x32xf32>
    %349 = arith.mulf %347, %348 : vector<16x32xf32>
    %350 = vector.broadcast %329 : vector<1x32xf32> to vector<16x32xf32>
    %351 = arith.addf %349, %350 : vector<16x32xf32>
    %c0_169 = arith.constant 0 : index
    %c0_170 = arith.constant 0 : index
    %352 = vector.load %arg23[%c0_169, %c0_170] : memref<32x32xbf16, #tpu.memory_space<vmem>>, vector<32x32xbf16>
    %353 = arith.truncf %351 : vector<16x32xf32> to vector<16x32xbf16>
    %cst_171 = arith.constant dense<0.000000e+00> : vector<16x32xf32>
    %354 = tpu.matmul %353, %352, %cst_171 {dimension_numbers = #tpu.dot_dimension_numbers<[1], [0], [0], [1], [0, 0, 1, 1], [], []>} : vector<16x32xbf16>, vector<32x32xbf16>, vector<16x32xf32> -> vector<16x32xf32>
    %c0_172 = arith.constant 0 : index
    %c0_173 = arith.constant 0 : index
    %355 = vector.load %arg24[%c0_172, %c0_173] : memref<1x32xf32, #tpu.memory_space<vmem>>, vector<1x32xf32>
    %356 = vector.broadcast %355 : vector<1x32xf32> to vector<16x32xf32>
    %357 = arith.addf %354, %356 : vector<16x32xf32>
    %358 = math.tanh %357 : vector<16x32xf32>
    %c0_174 = arith.constant 0 : index
    %c0_175 = arith.constant 0 : index
    %359 = vector.load %arg25[%c0_174, %c0_175] : memref<32x16xbf16, #tpu.memory_space<vmem>>, vector<32x16xbf16>
    %360 = arith.truncf %358 : vector<16x32xf32> to vector<16x32xbf16>
    %cst_176 = arith.constant dense<0.000000e+00> : vector<16x16xf32>
    %361 = tpu.matmul %360, %359, %cst_176 {dimension_numbers = #tpu.dot_dimension_numbers<[1], [0], [0], [1], [0, 0, 1, 1], [], []>} : vector<16x32xbf16>, vector<32x16xbf16>, vector<16x16xf32> -> vector<16x16xf32>
    %c0_177 = arith.constant 0 : index
    %c0_178 = arith.constant 0 : index
    %362 = vector.load %arg26[%c0_177, %c0_178] : memref<1x16xf32, #tpu.memory_space<vmem>>, vector<1x16xf32>
    %363 = vector.broadcast %362 : vector<1x16xf32> to vector<16x16xf32>
    %364 = arith.addf %361, %363 : vector<16x16xf32>
    %c0_179 = arith.constant 0 : index
    %c0_180 = arith.constant 0 : index
    %365 = vector.load %arg27[%c0_179, %c0_180] : memref<16x16xf32, #tpu.memory_space<vmem>>, vector<16x16xf32>
    tpu.vector_store %arg27[%c0_179, %c0_180], %364 {strides = array<i32>} : memref<16x16xf32, #tpu.memory_space<vmem>>, vector<16x16xf32>,
    return
  }
}

</mosaic_0001>

<llo_original>
// kernel: vit_forward.1
$region0: #{vit_forward.1}
  #allocation0 [shape = 'u32[]', space=smem, size = 0x4, offset = 0x4, fixed_abs, tag = 'smem constant byte address 0x4 - core index']
  #allocation1 [shape = 'u32[144,128]{1,0:T(1,128)}', space=vmem, size = 0x12000, scoped, tag = 'internal scratch']
  %s0 = inlined_call_operand.vmem [shape: f32[16,192], index: 0, kind: input, shape index: {}]
  %s1 = inlined_call_operand.vmem [shape: bf16[192,32], index: 1, kind: input, shape index: {}]
  %s2 = inlined_call_operand.vmem [shape: f32[16,32], index: 2, kind: input, shape index: {}]
  %s3 = inlined_call_operand.vmem [shape: f32[64,16], index: 3, kind: input, shape index: {}]
  %s4 = inlined_call_operand.vmem [shape: f32[64,32], index: 4, kind: input, shape index: {}]
  %s5 = inlined_call_operand.vmem [shape: f32[2,1,32], index: 5, kind: input, shape index: {}]
  %s6 = inlined_call_operand.vmem [shape: f32[2,1,32], index: 6, kind: input, shape index: {}]
  %s7 = inlined_call_operand.vmem [shape: bf16[2,32,32], index: 7, kind: input, shape index: {}]
  %s8 = inlined_call_operand.vmem [shape: f32[2,1,32], index: 8, kind: input, shape index: {}]
  %s9 = inlined_call_operand.vmem [shape: bf16[2,32,32], index: 9, kind: input, shape index: {}]
  %s10 = inlined_call_operand.vmem [shape: f32[2,1,32], index: 10, kind: input, shape index: {}]
  %s11 = inlined_call_operand.vmem [shape: bf16[2,32,32], index: 11, kind: input, shape index: {}]
  %s12 = inlined_call_operand.vmem [shape: f32[2,1,32], index: 12, kind: input, shape index: {}]
  %s13 = inlined_call_operand.vmem [shape: bf16[2,32,32], index: 13, kind: input, shape index: {}]
  %s14 = inlined_call_operand.vmem [shape: f32[2,1,32], index: 14, kind: input, shape index: {}]
  %s15 = inlined_call_operand.vmem [shape: f32[2,1,32], index: 15, kind: input, shape index: {}]
  %s16 = inlined_call_operand.vmem [shape: f32[2,1,32], index: 16, kind: input, shape index: {}]
  %s17 = inlined_call_operand.vmem [shape: bf16[2,32,128], index: 17, kind: input, shape index: {}]
  %s18 = inlined_call_operand.vmem [shape: f32[2,1,128], index: 18, kind: input, shape index: {}]
  %s19 = inlined_call_operand.vmem [shape: bf16[2,128,32], index: 19, kind: input, shape index: {}]
  %s20 = inlined_call_operand.vmem [shape: f32[2,1,32], index: 20, kind: input, shape index: {}]
  %s21 = inlined_call_operand.vmem [shape: f32[1,32], index: 21, kind: input, shape index: {}]
  %s22 = inlined_call_operand.vmem [shape: f32[1,32], index: 22, kind: input, shape index: {}]
  %s23 = inlined_call_operand.vmem [shape: bf16[32,32], index: 23, kind: input, shape index: {}]
  %s24 = inlined_call_operand.vmem [shape: f32[1,32], index: 24, kind: input, shape index: {}]
  %s25 = inlined_call_operand.vmem [shape: bf16[32,16], index: 25, kind: input, shape index: {}]
  %s26 = inlined_call_operand.vmem [shape: f32[1,16], index: 26, kind: input, shape index: {}]
  %s27 = inlined_call_operand.vmem [shape: f32[16,16], index: 27, kind: output, shape index: {}]
  %s28 = sld [smem:[#allocation0]]
  $region118: #{vit_forward.1} parent=0
    _
  %s30 = ssub.s32 1, %s28
  %s31 = scalar_select 0, %s30, %s28
  // Predicated region
  $region2: #{vit_forward.1} parent=0 // pred_check
    _
  $region3: #{vit_forward.1} parent=0 // pred_check_branch
    %33 = sbr.rel (0) target = $region5
  $region4: #{vit_forward.1} parent=0 // pred_region
    _
  $region5: #{vit_forward.1} parent=0 // pred_fallthru
    _
  // Predicated region
  $region6: #{vit_forward.1} parent=0 // pred_check
    _
  $region7: #{vit_forward.1} parent=0 // pred_check_branch
    %35 = sbr.rel (0) target = $region9
  $region8: #{vit_forward.1} parent=0 // pred_region
    _
  $region9: #{vit_forward.1} parent=0 // pred_fallthru
    _
  // Predicated region
  $region10: #{vit_forward.1} parent=0 // pred_check
    _
  $region11: #{vit_forward.1} parent=0 // pred_check_branch
    %37 = sbr.rel (0) target = $region13
  $region12: #{vit_forward.1} parent=0 // pred_region
    _
  $region13: #{vit_forward.1} parent=0 // pred_fallthru
    _
  // Predicated region
  $region14: #{vit_forward.1} parent=0 // pred_check
    _
  $region15: #{vit_forward.1} parent=0 // pred_check_branch
    %39 = sbr.rel (0) target = $region17
  $region16: #{vit_forward.1} parent=0 // pred_region
    _
  $region17: #{vit_forward.1} parent=0 // pred_fallthru
    _
  // Predicated region
  $region18: #{vit_forward.1} parent=0 // pred_check
    _
  $region19: #{vit_forward.1} parent=0 // pred_check_branch
    %41 = sbr.rel (0) target = $region21
  $region20: #{vit_forward.1} parent=0 // pred_region
    _
  $region21: #{vit_forward.1} parent=0 // pred_fallthru
    _
  // Predicated region
  $region22: #{vit_forward.1} parent=0 // pred_check
    _
  $region23: #{vit_forward.1} parent=0 // pred_check_branch
    %43 = sbr.rel (0) target = $region25
  $region24: #{vit_forward.1} parent=0 // pred_region
    _
  $region25: #{vit_forward.1} parent=0 // pred_fallthru
    _
  // Predicated region
  $region26: #{vit_forward.1} parent=0 // pred_check
    _
  $region27: #{vit_forward.1} parent=0 // pred_check_branch
    %45 = sbr.rel (0) target = $region29
  $region28: #{vit_forward.1} parent=0 // pred_region
    _
  $region29: #{vit_forward.1} parent=0 // pred_fallthru
    _
  // Predicated region
  $region30: #{vit_forward.1} parent=0 // pred_check
    _
  $region31: #{vit_forward.1} parent=0 // pred_check_branch
    %47 = sbr.rel (0) target = $region33
  $region32: #{vit_forward.1} parent=0 // pred_region
    _
  $region33: #{vit_forward.1} parent=0 // pred_fallthru
    _
  // Predicated region
  $region34: #{vit_forward.1} parent=0 // pred_check
    _
  $region35: #{vit_forward.1} parent=0 // pred_check_branch
    %49 = sbr.rel (0) target = $region37
  $region36: #{vit_forward.1} parent=0 // pred_region
    _
  $region37: #{vit_forward.1} parent=0 // pred_fallthru
    _
  // Predicated region
  $region38: #{vit_forward.1} parent=0 // pred_check
    _
  $region39: #{vit_forward.1} parent=0 // pred_check_branch
    %51 = sbr.rel (0) target = $region41
  $region40: #{vit_forward.1} parent=0 // pred_region
    _
  $region41: #{vit_forward.1} parent=0 // pred_fallthru
    _
  // Predicated region
  $region42: #{vit_forward.1} parent=0 // pred_check
    _
  $region43: #{vit_forward.1} parent=0 // pred_check_branch
    %53 = sbr.rel (0) target = $region45
  $region44: #{vit_forward.1} parent=0 // pred_region
    _
  $region45: #{vit_forward.1} parent=0 // pred_fallthru
    _
  // Predicated region
  $region46: #{vit_forward.1} parent=0 // pred_check
    _
  $region47: #{vit_forward.1} parent=0 // pred_check_branch
    %55 = sbr.rel (0) target = $region49
  $region48: #{vit_forward.1} parent=0 // pred_region
    _
  $region49: #{vit_forward.1} parent=0 // pred_fallthru
    _
  // Predicated region
  $region50: #{vit_forward.1} parent=0 // pred_check
    _
  $region51: #{vit_forward.1} parent=0 // pred_check_branch
    %57 = sbr.rel (0) target = $region53
  $region52: #{vit_forward.1} parent=0 // pred_region
    _
  $region53: #{vit_forward.1} parent=0 // pred_fallthru
    _
  // Predicated region
  $region54: #{vit_forward.1} parent=0 // pred_check
    _
  $region55: #{vit_forward.1} parent=0 // pred_check_branch
    %59 = sbr.rel (0) target = $region57
  $region56: #{vit_forward.1} parent=0 // pred_region
    _
  $region57: #{vit_forward.1} parent=0 // pred_fallthru
    _
  // Predicated region
  $region58: #{vit_forward.1} parent=0 // pred_check
    _
  $region59: #{vit_forward.1} parent=0 // pred_check_branch
    %61 = sbr.rel (0) target = $region61
  $region60: #{vit_forward.1} parent=0 // pred_region
    _
  $region61: #{vit_forward.1} parent=0 // pred_fallthru
    _
  // Predicated region
  $region62: #{vit_forward.1} parent=0 // pred_check
    _
  $region63: #{vit_forward.1} parent=0 // pred_check_branch
    %63 = sbr.rel (0) target = $region65
  $region64: #{vit_forward.1} parent=0 // pred_region
    _
  $region65: #{vit_forward.1} parent=0 // pred_fallthru
    _
  // Predicated region
  $region66: #{vit_forward.1} parent=0 // pred_check
    _
  $region67: #{vit_forward.1} parent=0 // pred_check_branch
    %65 = sbr.rel (0) target = $region69
  $region68: #{vit_forward.1} parent=0 // pred_region
    _
  $region69: #{vit_forward.1} parent=0 // pred_fallthru
    _
  // Predicated region
  $region70: #{vit_forward.1} parent=0 // pred_check
    _
  $region71: #{vit_forward.1} parent=0 // pred_check_branch
    %67 = sbr.rel (0) target = $region73
  $region72: #{vit_forward.1} parent=0 // pred_region
    _
  $region73: #{vit_forward.1} parent=0 // pred_fallthru
    _
  // Predicated region
  $region74: #{vit_forward.1} parent=0 // pred_check
    _
  $region75: #{vit_forward.1} parent=0 // pred_check_branch
    %69 = sbr.rel (0) target = $region77
  $region76: #{vit_forward.1} parent=0 // pred_region
    _
  $region77: #{vit_forward.1} parent=0 // pred_fallthru
    _
  // Predicated region
  $region78: #{vit_forward.1} parent=0 // pred_check
    _
  $region79: #{vit_forward.1} parent=0 // pred_check_branch
    %71 = sbr.rel (0) target = $region81
  $region80: #{vit_forward.1} parent=0 // pred_region
    _
  $region81: #{vit_forward.1} parent=0 // pred_fallthru
    _
  // Predicated region
  $region82: #{vit_forward.1} parent=0 // pred_check
    _
  $region83: #{vit_forward.1} parent=0 // pred_check_branch
    %73 = sbr.rel (0) target = $region85
  $region84: #{vit_forward.1} parent=0 // pred_region
    _
  $region85: #{vit_forward.1} parent=0 // pred_fallthru
    _
  // Predicated region
  $region86: #{vit_forward.1} parent=0 // pred_check
    _
  $region87: #{vit_forward.1} parent=0 // pred_check_branch
    %75 = sbr.rel (0) target = $region89
  $region88: #{vit_forward.1} parent=0 // pred_region
    _
  $region89: #{vit_forward.1} parent=0 // pred_fallthru
    _
  // Predicated region
  $region90: #{vit_forward.1} parent=0 // pred_check
    _
  $region91: #{vit_forward.1} parent=0 // pred_check_branch
    %77 = sbr.rel (0) target = $region93
  $region92: #{vit_forward.1} parent=0 // pred_region
    _
  $region93: #{vit_forward.1} parent=0 // pred_fallthru
    _
  // Predicated region
  $region94: #{vit_forward.1} parent=0 // pred_check
    _
  $region95: #{vit_forward.1} parent=0 // pred_check_branch
    %79 = sbr.rel (0) target = $region97
  $region96: #{vit_forward.1} parent=0 // pred_region
    _
  $region97: #{vit_forward.1} parent=0 // pred_fallthru
    _
  // Predicated region
  $region98: #{vit_forward.1} parent=0 // pred_check
    _
  $region99: #{vit_forward.1} parent=0 // pred_check_branch
    %81 = sbr.rel (0) target = $region101
  $region100: #{vit_forward.1} parent=0 // pred_region
    _
  $region101: #{vit_forward.1} parent=0 // pred_fallthru
    _
  // Predicated region
  $region102: #{vit_forward.1} parent=0 // pred_check
    _
  $region103: #{vit_forward.1} parent=0 // pred_check_branch
    %83 = sbr.rel (0) target = $region105
  $region104: #{vit_forward.1} parent=0 // pred_region
    _
  $region105: #{vit_forward.1} parent=0 // pred_fallthru
    _
  // Predicated region
  $region106: #{vit_forward.1} parent=0 // pred_check
    _
  $region107: #{vit_forward.1} parent=0 // pred_check_branch
    %85 = sbr.rel (0) target = $region109
  $region108: #{vit_forward.1} parent=0 // pred_region
    _
  $region109: #{vit_forward.1} parent=0 // pred_fallthru
    _
  %v87 = vld [vmem:[%s0] sm:$0xff]
  %v88 = vld [vmem:[%s0 + $0x8] sm:$0xff]
  %v89 = vld [vmem:[%s0 + $0x10] sm:$0xff]
  %v90 = vld [vmem:[%s0 + $0x18] sm:$0xff]
  %v91 = vld [vmem:[%s1] sm:$0xf]
  %v92 = vld [vmem:[%s1 + $0x4] sm:$0xf]
  %v93 = vld [vmem:[%s1 + $0x8] sm:$0xf]
  %v94 = vld [vmem:[%s1 + $0xc] sm:$0xf]
  %v95 = vld [vmem:[%s1 + $0x10] sm:$0xf]
  %v96 = vld [vmem:[%s1 + $0x14] sm:$0xf]
  %v97 = vld [vmem:[%s1 + $0x18] sm:$0xf]
  %v98 = vld [vmem:[%s1 + $0x1c] sm:$0xf]
  %v99 = vld [vmem:[%s1 + $0x20] sm:$0xf]
  %v100 = vld [vmem:[%s1 + $0x24] sm:$0xf]
  %v101 = vld [vmem:[%s1 + $0x28] sm:$0xf]
  %v102 = vld [vmem:[%s1 + $0x2c] sm:$0xf]
  %v103 = vld [vmem:[%s1 + $0x30] sm:$0xf]
  %v104 = vld [vmem:[%s1 + $0x34] sm:$0xf]
  %v105 = vld [vmem:[%s1 + $0x38] sm:$0xf]
  %v106 = vld [vmem:[%s1 + $0x3c] sm:$0xf]
  %v107 = vld [vmem:[%s1 + $0x40] sm:$0xf]
  %v108 = vld [vmem:[%s1 + $0x44] sm:$0xf]
  %v109 = vld [vmem:[%s1 + $0x48] sm:$0xf]
  %v110 = vld [vmem:[%s1 + $0x4c] sm:$0xf]
  %v111 = vld [vmem:[%s1 + $0x50] sm:$0xf]
  %v112 = vld [vmem:[%s1 + $0x54] sm:$0xf]
  %v113 = vld [vmem:[%s1 + $0x58] sm:$0xf]
  %v114 = vld [vmem:[%s1 + $0x5c] sm:$0xf]
  %v115 = vpack.c.bf16 %v89, %v87
  %v116 = vpack.c.bf16 %v90, %v88
  %v117 = vld [vmem:[%s2] sm:$0xff]
  %v118 = vld [vmem:[%s2 + $0x8] sm:$0xff]
  %v143 = vunpack.c.l.b16 %v91
  %v144 = vunpack.c.l.b16 %v92
  %v145 = vunpack.c.l.b16 %v93
  %v146 = vunpack.c.l.b16 %v94
  %v147 = vunpack.c.l.b16 %v95
  %v148 = vunpack.c.l.b16 %v96
  %v149 = vunpack.c.l.b16 %v97
  %v150 = vunpack.c.l.b16 %v98
  %v151 = vunpack.c.l.b16 %v99
  %v152 = vunpack.c.l.b16 %v100
  %v153 = vunpack.c.l.b16 %v101
  %v154 = vunpack.c.l.b16 %v102
  %v155 = vunpack.c.l.b16 %v103
  %v156 = vunpack.c.l.b16 %v104
  %v157 = vunpack.c.l.b16 %v105
  %v158 = vunpack.c.l.b16 %v106
  %v159 = vunpack.c.l.b16 %v107
  %v160 = vunpack.c.l.b16 %v108
  %v161 = vunpack.c.l.b16 %v109
  %v162 = vunpack.c.l.b16 %v110
  %v163 = vunpack.c.l.b16 %v111
  %v164 = vunpack.c.l.b16 %v112
  %v165 = vunpack.c.l.b16 %v113
  %v166 = vunpack.c.l.b16 %v114
  %v167 = vpack.c.b16 %v144, %v143
  %v168 = vpack.c.b16 %v146, %v145
  %v169 = vpack.c.b16 %v148, %v147
  %v170 = vpack.c.b16 %v150, %v149
  %v171 = vpack.c.b16 %v152, %v151
  %v172 = vpack.c.b16 %v154, %v153
  %v173 = vpack.c.b16 %v156, %v155
  %v174 = vpack.c.b16 %v158, %v157
  %v175 = vpack.c.b16 %v160, %v159
  %v176 = vpack.c.b16 %v162, %v161
  %v177 = vpack.c.b16 %v164, %v163
  %v178 = vpack.c.b16 %v166, %v165
  %vm191 = vcmask 523264
  %v193 = vsel %vm191, %v116, 0
  %195 = vmatprep.subr.bf16.mxu0 0
  %196 = vmatpush1.bf16.msra.mxu0 %v167
  %197 = vmatprep.subr.bf16.mxu0 0
  %198 = vmatpush1.bf16.msra.mxu0 %v168
  %199 = vmatprep.subr.bf16.mxu0 0
  %200 = vmatpush1.bf16.msra.mxu0 %v169
  %201 = vmatprep.subr.bf16.mxu0 0
  %202 = vmatpush1.bf16.msra.mxu0 %v170
  %203 = vmatprep.subr.bf16.mxu0 0
  %204 = vmatpush1.bf16.msra.mxu0 %v171
  %205 = vmatprep.subr.bf16.mxu0 0
  %206 = vmatpush1.bf16.msra.mxu0 %v172
  %207 = vmatprep.subr.bf16.mxu0 0
  %208 = vmatpush1.bf16.msra.mxu0 %v173
  %209 = vmatprep.subr.bf16.mxu0 0
  %210 = vmatpush1.bf16.msra.mxu0 %v174
  %211 = vmatprep.subr.bf16.mxu0 0
  %212 = vmatpush1.bf16.msra.mxu0 %v175
  %213 = vmatprep.subr.bf16.mxu0 0
  %214 = vmatpush1.bf16.msra.mxu0 %v176
  %215 = vmatprep.subr.bf16.mxu0 0
  %216 = vmatpush1.bf16.msra.mxu0 %v177
  %217 = vmatprep.subr.bf16.mxu0 0
  %218 = vmatpush1.bf16.msra.mxu0 %v178
  %219 = vmatprep.subr.bf16.mxu0 0
  %220 = vmatpush1.bf16.msra.mxu0 0
  %221 = vmatprep.subr.bf16.mxu0 0
  %222 = vmatpush1.bf16.msra.mxu0 0
  %223 = vmatprep.subr.bf16.mxu0 0
  %224 = vmatpush1.bf16.msra.mxu0 0
  %225 = vmatprep.subr.bf16.mxu0 0
  %226 = vmatpush1.bf16.msra.mxu0 0
  %227 = vmatprep.mubr.bf16.mxu0 %v193
  %228 = vmatmul.mubr.bf16.gmra.mrb[0].mxu0 %v115
  %v229 = vpop.f32.mrb[0].mxu0
  %v230 = vadd.f32 %v117, %v229
  %v231 = vpop.f32.mrb[0].mxu0
  %v232 = vpop.f32.mrb[0].mxu0
  %v233 = vadd.f32 %v118, %v232
  %v234 = vpop.f32.mrb[0].mxu0
  %235 = vdwg.mxu0
  %v236 = vld [vmem:[%s4] sm:$0xff]
  %v237 = vld [vmem:[%s4 + $0x8] sm:$0xff]
  %v238 = vld [vmem:[%s4 + $0x10] sm:$0xff]
  %v239 = vld [vmem:[%s4 + $0x18] sm:$0xff]
  %v240 = vld [vmem:[%s4 + $0x20] sm:$0xff]
  %v241 = vld [vmem:[%s4 + $0x28] sm:$0xff]
  %v242 = vld [vmem:[%s4 + $0x30] sm:$0xff]
  %v243 = vld [vmem:[%s4 + $0x38] sm:$0xff]
  %v244 = vld [vmem:[%s3] sm:$0xff]
  %v245 = vld [vmem:[%s3 + $0x8] sm:$0xff]
  %v246 = vld [vmem:[%s3 + $0x10] sm:$0xff]
  %v247 = vld [vmem:[%s3 + $0x18] sm:$0xff]
  %v248 = vld [vmem:[%s3 + $0x20] sm:$0xff]
  %v249 = vld [vmem:[%s3 + $0x28] sm:$0xff]
  %v250 = vld [vmem:[%s3 + $0x30] sm:$0xff]
  %v251 = vld [vmem:[%s3 + $0x38] sm:$0xff]
  %v252 = vld [vmem:[%s5] sm:$0x1]
  %v253 = vld [vmem:[%s6] sm:$0x1]
  %vm254 = vcmask 261120
  %v255 = vsel %vm254, %v230, 0.0
  %256 = vadd.xlane.f32.xlu0 %v255
  %v257 = vpop.xlane.xlu0 %256
  %v258 = vsel %vm254, %v233, 0.0
  %259 = vadd.xlane.f32.xlu0 %v258
  %v260 = vpop.xlane.xlu0 %259
  %v261 = vrcp.pop 32.0
  %v262 = vmul.f32 %v257, %v261
  %v263 = vmul.f32 %v260, %v261
  %v264 = vsub.f32 %v230, %v262
  %v265 = vsub.f32 %v233, %v263
  %v266 = vmul.f32 %v264, %v264
  %v267 = vmul.f32 %v265, %v265
  %v268 = vsel %vm254, %v266, 0.0
  %269 = vadd.xlane.f32.xlu0 %v268
  %v270 = vpop.xlane.xlu0 %269
  %v271 = vsel %vm254, %v267, 0.0
  %272 = vadd.xlane.f32.xlu0 %v271
  %v273 = vpop.xlane.xlu0 %272
  %v274 = vmul.f32 %v270, %v261
  %v275 = vmul.f32 %v273, %v261
  %v276 = vadd.f32 %v274, 1e-05
  %v277 = vadd.f32 %v275, 1e-05
  %v278 = vrsqrt.pop %v276
  %v279 = vrsqrt.pop %v277
  %v280 = vmul.f32 %v264, %v278
  %v281 = vmul.f32 %v265, %v279
  %v283 = vlaneseq
  %v284 = vshrl.u32 %v283, 7
  %v285 = vsub.s32 0, %v284
  %v286 = vrot.slane %v252, %v285
  %v288 = vmul.f32 %v280, %v286
  %v289 = vmul.f32 %v281, %v286
  %v291 = vlaneseq
  %v292 = vshrl.u32 %v291, 7
  %v293 = vsub.s32 0, %v292
  %v294 = vrot.slane %v253, %v293
  %v296 = vadd.f32 %v288, %v294
  %v297 = vadd.f32 %v289, %v294
  %v298 = vld [vmem:[%s7] sm:$0xf]
  %v299 = vld [vmem:[%s7 + $0x4] sm:$0xf]
  %v300 = vld [vmem:[%s7 + $0x8] sm:$0xf]
  %v301 = vld [vmem:[%s7 + $0xc] sm:$0xf]
  %v302 = vpack.c.bf16 %v297, %v296
  %v303 = vld [vmem:[%s8] sm:$0x1]
  %v305 = vlaneseq
  %v306 = vshrl.u32 %v305, 7
  %v307 = vsub.s32 0, %v306
  %v308 = vrot.slane %v303, %v307
  %v314 = vunpack.c.l.b16 %v298
  %v315 = vunpack.c.l.b16 %v299
  %v316 = vunpack.c.l.b16 %v300
  %v317 = vunpack.c.l.b16 %v301
  %v318 = vpack.c.b16 %v315, %v314
  %v319 = vpack.c.b16 %v317, %v316
  %v323 = vsel %vm254, %v302, 0
  %325 = vmatprep.subr.bf16.mxu0 0
  %326 = vmatpush1.bf16.msra.mxu0 %v318
  %327 = vmatprep.subr.bf16.mxu0 0
  %328 = vmatpush1.bf16.msra.mxu0 %v319
  %329 = vmatprep.subr.bf16.mxu0 0
  %330 = vmatpush1.bf16.msra.mxu0 0
  %331 = vmatprep.subr.bf16.mxu0 0
  %332 = vmatpush1.bf16.msra.mxu0 0
  %333 = vmatprep.subr.bf16.mxu0 0
  %334 = vmatpush1.bf16.msra.mxu0 0
  %335 = vmatprep.subr.bf16.mxu0 0
  %336 = vmatpush1.bf16.msra.mxu0 0
  %337 = vmatprep.subr.bf16.mxu0 0
  %338 = vmatpush1.bf16.msra.mxu0 0
  %339 = vmatprep.subr.bf16.mxu0 0
  %340 = vmatpush1.bf16.msra.mxu0 0
  %341 = vmatprep.subr.bf16.mxu0 0
  %342 = vmatpush1.bf16.msra.mxu0 0
  %343 = vmatprep.subr.bf16.mxu0 0
  %344 = vmatpush1.bf16.msra.mxu0 0
  %345 = vmatprep.subr.bf16.mxu0 0
  %346 = vmatpush1.bf16.msra.mxu0 0
  %347 = vmatprep.subr.bf16.mxu0 0
  %348 = vmatpush1.bf16.msra.mxu0 0
  %349 = vmatprep.subr.bf16.mxu0 0
  %350 = vmatpush1.bf16.msra.mxu0 0
  %351 = vmatprep.subr.bf16.mxu0 0
  %352 = vmatpush1.bf16.msra.mxu0 0
  %353 = vmatprep.subr.bf16.mxu0 0
  %354 = vmatpush1.bf16.msra.mxu0 0
  %355 = vmatprep.subr.bf16.mxu0 0
  %356 = vmatpush1.bf16.msra.mxu0 0
  %357 = vmatprep.mubr.bf16.mxu0 0
  %358 = vmatmul.mubr.bf16.gmra.mrb[0].mxu0 %v323
  %v359 = vpop.f32.mrb[0].mxu0
  %v360 = vadd.f32 %v308, %v359
  %v361 = vpop.f32.mrb[0].mxu0
  %v362 = vpop.f32.mrb[0].mxu0
  %v363 = vadd.f32 %v308, %v362
  %v364 = vpop.f32.mrb[0].mxu0
  %365 = vdwg.mxu0
  %v366 = vld [vmem:[%s9] sm:$0xf]
  %v367 = vld [vmem:[%s9 + $0x4] sm:$0xf]
  %v368 = vld [vmem:[%s9 + $0x8] sm:$0xf]
  %v369 = vld [vmem:[%s9 + $0xc] sm:$0xf]
  %v370 = vld [vmem:[%s10] sm:$0x1]
  %v372 = vlaneseq
  %v373 = vshrl.u32 %v372, 7
  %v374 = vsub.s32 0, %v373
  %v375 = vrot.slane %v370, %v374
  %v381 = vunpack.c.l.b16 %v366
  %v382 = vunpack.c.l.b16 %v367
  %v383 = vunpack.c.l.b16 %v368
  %v384 = vunpack.c.l.b16 %v369
  %v385 = vpack.c.b16 %v382, %v381
  %v386 = vpack.c.b16 %v384, %v383
  %389 = vmatprep.subr.bf16.mxu0 0
  %390 = vmatpush1.bf16.msra.mxu0 %v385
  %391 = vmatprep.subr.bf16.mxu0 0
  %392 = vmatpush1.bf16.msra.mxu0 %v386
  %393 = vmatprep.subr.bf16.mxu0 0
  %394 = vmatpush1.bf16.msra.mxu0 0
  %395 = vmatprep.subr.bf16.mxu0 0
  %396 = vmatpush1.bf16.msra.mxu0 0
  %397 = vmatprep.subr.bf16.mxu0 0
  %398 = vmatpush1.bf16.msra.mxu0 0
  %399 = vmatprep.subr.bf16.mxu0 0
  %400 = vmatpush1.bf16.msra.mxu0 0
  %401 = vmatprep.subr.bf16.mxu0 0
  %402 = vmatpush1.bf16.msra.mxu0 0
  %403 = vmatprep.subr.bf16.mxu0 0
  %404 = vmatpush1.bf16.msra.mxu0 0
  %405 = vmatprep.subr.bf16.mxu0 0
  %406 = vmatpush1.bf16.msra.mxu0 0
  %407 = vmatprep.subr.bf16.mxu0 0
  %408 = vmatpush1.bf16.msra.mxu0 0
  %409 = vmatprep.subr.bf16.mxu0 0
  %410 = vmatpush1.bf16.msra.mxu0 0
  %411 = vmatprep.subr.bf16.mxu0 0
  %412 = vmatpush1.bf16.msra.mxu0 0
  %413 = vmatprep.subr.bf16.mxu0 0
  %414 = vmatpush1.bf16.msra.mxu0 0
  %415 = vmatprep.subr.bf16.mxu0 0
  %416 = vmatpush1.bf16.msra.mxu0 0
  %417 = vmatprep.subr.bf16.mxu0 0
  %418 = vmatpush1.bf16.msra.mxu0 0
  %419 = vmatprep.subr.bf16.mxu0 0
  %420 = vmatpush1.bf16.msra.mxu0 0
  %421 = vmatprep.mubr.bf16.mxu0 0
  %422 = vmatmul.mubr.bf16.gmra.mrb[0].mxu0 %v323
  %v423 = vpop.f32.mrb[0].mxu0
  %v424 = vadd.f32 %v375, %v423
  %v425 = vpop.f32.mrb[0].mxu0
  %v426 = vpop.f32.mrb[0].mxu0
  %v427 = vadd.f32 %v375, %v426
  %v428 = vpop.f32.mrb[0].mxu0
  %429 = vdwg.mxu0
  %v430 = vld [vmem:[%s11] sm:$0xf]
  %v431 = vld [vmem:[%s11 + $0x4] sm:$0xf]
  %v432 = vld [vmem:[%s11 + $0x8] sm:$0xf]
  %v433 = vld [vmem:[%s11 + $0xc] sm:$0xf]
  %v434 = vld [vmem:[%s12] sm:$0x1]
  %v436 = vlaneseq
  %v437 = vshrl.u32 %v436, 7
  %v438 = vsub.s32 0, %v437
  %v439 = vrot.slane %v434, %v438
  %v445 = vunpack.c.l.b16 %v430
  %v446 = vunpack.c.l.b16 %v431
  %v447 = vunpack.c.l.b16 %v432
  %v448 = vunpack.c.l.b16 %v433
  %v449 = vpack.c.b16 %v446, %v445
  %v450 = vpack.c.b16 %v448, %v447
  %453 = vmatprep.subr.bf16.mxu0 0
  %454 = vmatpush1.bf16.msra.mxu0 %v449
  %455 = vmatprep.subr.bf16.mxu0 0
  %456 = vmatpush1.bf16.msra.mxu0 %v450
  %457 = vmatprep.subr.bf16.mxu0 0
  %458 = vmatpush1.bf16.msra.mxu0 0
  %459 = vmatprep.subr.bf16.mxu0 0
  %460 = vmatpush1.bf16.msra.mxu0 0
  %461 = vmatprep.subr.bf16.mxu0 0
  %462 = vmatpush1.bf16.msra.mxu0 0
  %463 = vmatprep.subr.bf16.mxu0 0
  %464 = vmatpush1.bf16.msra.mxu0 0
  %465 = vmatprep.subr.bf16.mxu0 0
  %466 = vmatpush1.bf16.msra.mxu0 0
  %467 = vmatprep.subr.bf16.mxu0 0
  %468 = vmatpush1.bf16.msra.mxu0 0
  %469 = vmatprep.subr.bf16.mxu0 0
  %470 = vmatpush1.bf16.msra.mxu0 0
  %471 = vmatprep.subr.bf16.mxu0 0
  %472 = vmatpush1.bf16.msra.mxu0 0
  %473 = vmatprep.subr.bf16.mxu0 0
  %474 = vmatpush1.bf16.msra.mxu0 0
  %475 = vmatprep.subr.bf16.mxu0 0
  %476 = vmatpush1.bf16.msra.mxu0 0
  %477 = vmatprep.subr.bf16.mxu0 0
  %478 = vmatpush1.bf16.msra.mxu0 0
  %479 = vmatprep.subr.bf16.mxu0 0
  %480 = vmatpush1.bf16.msra.mxu0 0
  %481 = vmatprep.subr.bf16.mxu0 0
  %482 = vmatpush1.bf16.msra.mxu0 0
  %483 = vmatprep.subr.bf16.mxu0 0
  %484 = vmatpush1.bf16.msra.mxu0 0
  %485 = vmatprep.mubr.bf16.mxu0 0
  %486 = vmatmul.mubr.bf16.gmra.mrb[0].mxu0 %v323
  %v487 = vpop.f32.mrb[0].mxu0
  %v488 = vadd.f32 %v439, %v487
  %v489 = vpop.f32.mrb[0].mxu0
  %v490 = vpop.f32.mrb[0].mxu0
  %v491 = vadd.f32 %v439, %v490
  %v492 = vpop.f32.mrb[0].mxu0
  %493 = vdwg.mxu0
  %v494 = vmul.f32 %v360, %v236
  %v495 = vmul.f32 %v363, %v237
  %v496 = vmul.f32 %v360, %v238
  %v497 = vmul.f32 %v363, %v239
  %v498 = vmul.f32 %v360, %v240
  %v499 = vmul.f32 %v363, %v241
  %v500 = vmul.f32 %v360, %v242
  %v501 = vmul.f32 %v363, %v243
  %v502 = vpack.c.bf16 %v495, %v494
  %v503 = vpack.c.bf16 %v497, %v496
  %v504 = vpack.c.bf16 %v499, %v498
  %v505 = vpack.c.bf16 %v501, %v500
  %v506 = vpack.c.bf16 %v427, %v424
  %v508 = vsel %vm254, %v502, 0
  %v511 = vsel %vm254, %v503, 0
  %v514 = vsel %vm254, %v504, 0
  %v517 = vsel %vm254, %v505, 0
  %v520 = vsel %vm254, %v506, 0
  %522 = vmatprep.subr.bf16.mxu0 0
  %523 = vmatpush1.bf16.xpose.msra.mxu0 %v520
  %524 = vmatprep.subr.bf16.mxu0 0
  %525 = vmatpush1.bf16.xpose.msra.mxu0 0
  %526 = vmatprep.subr.bf16.mxu0 0
  %527 = vmatpush1.bf16.xpose.msra.mxu0 0
  %528 = vmatprep.subr.bf16.mxu0 0
  %529 = vmatpush1.bf16.xpose.msra.mxu0 0
  %530 = vmatprep.subr.bf16.mxu0 0
  %531 = vmatpush1.bf16.xpose.msra.mxu0 0
  %532 = vmatprep.subr.bf16.mxu0 0
  %533 = vmatpush1.bf16.xpose.msra.mxu0 0
  %534 = vmatprep.subr.bf16.mxu0 0
  %535 = vmatpush1.bf16.xpose.msra.mxu0 0
  %536 = vmatprep.subr.bf16.mxu0 0
  %537 = vmatpush1.bf16.xpose.msra.mxu0 0
  %538 = vmatprep.subr.bf16.mxu0 0
  %539 = vmatpush1.bf16.xpose.msra.mxu0 0
  %540 = vmatprep.subr.bf16.mxu0 0
  %541 = vmatpush1.bf16.xpose.msra.mxu0 0
  %542 = vmatprep.subr.bf16.mxu0 0
  %543 = vmatpush1.bf16.xpose.msra.mxu0 0
  %544 = vmatprep.subr.bf16.mxu0 0
  %545 = vmatpush1.bf16.xpose.msra.mxu0 0
  %546 = vmatprep.subr.bf16.mxu0 0
  %547 = vmatpush1.bf16.xpose.msra.mxu0 0
  %548 = vmatprep.subr.bf16.mxu0 0
  %549 = vmatpush1.bf16.xpose.msra.mxu0 0
  %550 = vmatprep.subr.bf16.mxu0 0
  %551 = vmatpush1.bf16.xpose.msra.mxu0 0
  %552 = vmatprep.subr.bf16.mxu0 0
  %553 = vmatpush1.bf16.xpose.msra.mxu0 0
  %554 = vmatprep.mubr.bf16.mxu0 0
  %555 = vmatmul.mubr.bf16.gmra.mrb[0].mxu0 %v508
  %v556 = vpop.f32.mrb[0].mxu0
  %v557 = vadd.f32 %v244, %v556
  %v558 = vpop.f32.mrb[0].mxu0
  %v559 = vpop.f32.mrb[0].mxu0
  %v560 = vadd.f32 %v245, %v559
  %v561 = vpop.f32.mrb[0].mxu0
  %562 = vmatprep.mubr.bf16.mxu0 0
  %563 = vmatmul.mubr.bf16.gmra.mrb[0].mxu0 %v511
  %v564 = vpop.f32.mrb[0].mxu0
  %v565 = vadd.f32 %v246, %v564
  %v566 = vpop.f32.mrb[0].mxu0
  %v567 = vpop.f32.mrb[0].mxu0
  %v568 = vadd.f32 %v247, %v567
  %v569 = vpop.f32.mrb[0].mxu0
  %570 = vmatprep.mubr.bf16.mxu0 0
  %571 = vmatmul.mubr.bf16.gmra.mrb[0].mxu0 %v514
  %v572 = vpop.f32.mrb[0].mxu0
  %v573 = vadd.f32 %v248, %v572
  %v574 = vpop.f32.mrb[0].mxu0
  %v575 = vpop.f32.mrb[0].mxu0
  %v576 = vadd.f32 %v249, %v575
  %v577 = vpop.f32.mrb[0].mxu0
  %578 = vmatprep.mubr.bf16.mxu0 0
  %579 = vmatmul.mubr.bf16.gmra.mrb[0].mxu0 %v517
  %v580 = vpop.f32.mrb[0].mxu0
  %v581 = vadd.f32 %v250, %v580
  %v582 = vpop.f32.mrb[0].mxu0
  %v583 = vpop.f32.mrb[0].mxu0
  %v584 = vadd.f32 %v251, %v583
  %v585 = vpop.f32.mrb[0].mxu0
  %586 = vdwg.mxu0
  %vm587 = vcmask 130048
  %v588 = vsel %vm587, %v557, -inf
  %589 = vmax.xlane.f32.xlu0 %v588
  %v590 = vpop.xlane.xlu0 %589
  %v591 = vsel %vm587, %v560, -inf
  %592 = vmax.xlane.f32.xlu0 %v591
  %v593 = vpop.xlane.xlu0 %592
  %v594 = vsel %vm587, %v565, -inf
  %595 = vmax.xlane.f32.xlu0 %v594
  %v596 = vpop.xlane.xlu0 %595
  %v597 = vsel %vm587, %v568, -inf
  %598 = vmax.xlane.f32.xlu0 %v597
  %v599 = vpop.xlane.xlu0 %598
  %v600 = vsel %vm587, %v573, -inf
  %601 = vmax.xlane.f32.xlu0 %v600
  %v602 = vpop.xlane.xlu0 %601
  %v603 = vsel %vm587, %v576, -inf
  %604 = vmax.xlane.f32.xlu0 %v603
  %v605 = vpop.xlane.xlu0 %604
  %v606 = vsel %vm587, %v581, -inf
  %607 = vmax.xlane.f32.xlu0 %v606
  %v608 = vpop.xlane.xlu0 %607
  %v609 = vsel %vm587, %v584, -inf
  %610 = vmax.xlane.f32.xlu0 %v609
  %v611 = vpop.xlane.xlu0 %610
  %v612 = vsub.f32 %v557, %v590
  %v613 = vsub.f32 %v560, %v593
  %v614 = vsub.f32 %v565, %v596
  %v615 = vsub.f32 %v568, %v599
  %v616 = vsub.f32 %v573, %v602
  %v617 = vsub.f32 %v576, %v605
  %v618 = vsub.f32 %v581, %v608
  %v619 = vsub.f32 %v584, %v611
  %v620 = vmul.f32 %v612, 1.442695
  %v621 = vpow.pop %v620
  %v622 = vmul.f32 %v613, 1.442695
  %v623 = vpow.pop %v622
  %v624 = vmul.f32 %v614, 1.442695
  %v625 = vpow.pop %v624
  %v626 = vmul.f32 %v615, 1.442695
  %v627 = vpow.pop %v626
  %v628 = vmul.f32 %v616, 1.442695
  %v629 = vpow.pop %v628
  %v630 = vmul.f32 %v617, 1.442695
  %v631 = vpow.pop %v630
  %v632 = vmul.f32 %v618, 1.442695
  %v633 = vpow.pop %v632
  %v634 = vmul.f32 %v619, 1.442695
  %v635 = vpow.pop %v634
  %v636 = vsel %vm587, %v621, 0.0
  %637 = vadd.xlane.f32.xlu0 %v636
  %v638 = vpop.xlane.xlu0 %637
  %v639 = vsel %vm587, %v623, 0.0
  %640 = vadd.xlane.f32.xlu0 %v639
  %v641 = vpop.xlane.xlu0 %640
  %v642 = vsel %vm587, %v625, 0.0
  %643 = vadd.xlane.f32.xlu0 %v642
  %v644 = vpop.xlane.xlu0 %643
  %v645 = vsel %vm587, %v627, 0.0
  %646 = vadd.xlane.f32.xlu0 %v645
  %v647 = vpop.xlane.xlu0 %646
  %v648 = vsel %vm587, %v629, 0.0
  %649 = vadd.xlane.f32.xlu0 %v648
  %v650 = vpop.xlane.xlu0 %649
  %v651 = vsel %vm587, %v631, 0.0
  %652 = vadd.xlane.f32.xlu0 %v651
  %v653 = vpop.xlane.xlu0 %652
  %v654 = vsel %vm587, %v633, 0.0
  %655 = vadd.xlane.f32.xlu0 %v654
  %v656 = vpop.xlane.xlu0 %655
  %v657 = vsel %vm587, %v635, 0.0
  %658 = vadd.xlane.f32.xlu0 %v657
  %v659 = vpop.xlane.xlu0 %658
  %v660 = vrcp.pop %v638
  %v661 = vrcp.pop %v641
  %v662 = vrcp.pop %v644
  %v663 = vrcp.pop %v647
  %v664 = vrcp.pop %v650
  %v665 = vrcp.pop %v653
  %v666 = vrcp.pop %v656
  %v667 = vrcp.pop %v659
  %v668 = vmul.f32 %v621, %v660
  %v669 = vmul.f32 %v623, %v661
  %v670 = vmul.f32 %v625, %v662
  %v671 = vmul.f32 %v627, %v663
  %v672 = vmul.f32 %v629, %v664
  %v673 = vmul.f32 %v631, %v665
  %v674 = vmul.f32 %v633, %v666
  %v675 = vmul.f32 %v635, %v667
  %v676 = vmul.f32 %v488, %v236
  %v677 = vmul.f32 %v491, %v237
  %v678 = vpack.c.bf16 %v669, %v668
  %v679 = vpack.c.bf16 %v677, %v676
  %v680 = vmul.f32 %v488, %v238
  %v681 = vmul.f32 %v491, %v239
  %v682 = vpack.c.bf16 %v671, %v670
  %v683 = vpack.c.bf16 %v681, %v680
  %v685 = vsel %vm587, %v682, 0
  %687 = vmatprep.subr.bf16.mxu0 0
  %688 = vmatpush1.bf16.msra.mxu0 %v683
  %689 = vmatprep.subr.bf16.mxu0 0
  %690 = vmatpush1.bf16.msra.mxu0 0
  %691 = vmatprep.subr.bf16.mxu0 0
  %692 = vmatpush1.bf16.msra.mxu0 0
  %693 = vmatprep.subr.bf16.mxu0 0
  %694 = vmatpush1.bf16.msra.mxu0 0
  %695 = vmatprep.subr.bf16.mxu0 0
  %696 = vmatpush1.bf16.msra.mxu0 0
  %697 = vmatprep.subr.bf16.mxu0 0
  %698 = vmatpush1.bf16.msra.mxu0 0
  %699 = vmatprep.subr.bf16.mxu0 0
  %700 = vmatpush1.bf16.msra.mxu0 0
  %701 = vmatprep.subr.bf16.mxu0 0
  %702 = vmatpush1.bf16.msra.mxu0 0
  %703 = vmatprep.subr.bf16.mxu0 0
  %704 = vmatpush1.bf16.msra.mxu0 0
  %705 = vmatprep.subr.bf16.mxu0 0
  %706 = vmatpush1.bf16.msra.mxu0 0
  %707 = vmatprep.subr.bf16.mxu0 0
  %708 = vmatpush1.bf16.msra.mxu0 0
  %709 = vmatprep.subr.bf16.mxu0 0
  %710 = vmatpush1.bf16.msra.mxu0 0
  %711 = vmatprep.subr.bf16.mxu0 0
  %712 = vmatpush1.bf16.msra.mxu0 0
  %713 = vmatprep.subr.bf16.mxu0 0
  %714 = vmatpush1.bf16.msra.mxu0 0
  %715 = vmatprep.subr.bf16.mxu0 0
  %716 = vmatpush1.bf16.msra.mxu0 0
  %717 = vmatprep.subr.bf16.mxu0 0
  %718 = vmatpush1.bf16.msra.mxu0 0
  %719 = vmatprep.mubr.bf16.mxu0 0
  %720 = vmatmul.mubr.bf16.gmra.mrb[0].mxu0 %v685
  %v721 = vpop.f32.mrb[0].mxu0
  %v722 = vadd.f32 0.0, %v721
  %v723 = vpop.f32.mrb[0].mxu0
  %v724 = vpop.f32.mrb[0].mxu0
  %v725 = vadd.f32 0.0, %v724
  %v726 = vpop.f32.mrb[0].mxu0
  %727 = vdwg.mxu0
  %v729 = vsel %vm587, %v678, 0
  %731 = vmatprep.subr.bf16.mxu0 0
  %732 = vmatpush1.bf16.msra.mxu0 %v679
  %733 = vmatprep.subr.bf16.mxu0 0
  %734 = vmatpush1.bf16.msra.mxu0 0
  %735 = vmatprep.subr.bf16.mxu0 0
  %736 = vmatpush1.bf16.msra.mxu0 0
  %737 = vmatprep.subr.bf16.mxu0 0
  %738 = vmatpush1.bf16.msra.mxu0 0
  %739 = vmatprep.subr.bf16.mxu0 0
  %740 = vmatpush1.bf16.msra.mxu0 0
  %741 = vmatprep.subr.bf16.mxu0 0
  %742 = vmatpush1.bf16.msra.mxu0 0
  %743 = vmatprep.subr.bf16.mxu0 0
  %744 = vmatpush1.bf16.msra.mxu0 0
  %745 = vmatprep.subr.bf16.mxu0 0
  %746 = vmatpush1.bf16.msra.mxu0 0
  %747 = vmatprep.subr.bf16.mxu0 0
  %748 = vmatpush1.bf16.msra.mxu0 0
  %749 = vmatprep.subr.bf16.mxu0 0
  %750 = vmatpush1.bf16.msra.mxu0 0
  %751 = vmatprep.subr.bf16.mxu0 0
  %752 = vmatpush1.bf16.msra.mxu0 0
  %753 = vmatprep.subr.bf16.mxu0 0
  %754 = vmatpush1.bf16.msra.mxu0 0
  %755 = vmatprep.subr.bf16.mxu0 0
  %756 = vmatpush1.bf16.msra.mxu0 0
  %757 = vmatprep.subr.bf16.mxu0 0
  %758 = vmatpush1.bf16.msra.mxu0 0
  %759 = vmatprep.subr.bf16.mxu0 0
  %760 = vmatpush1.bf16.msra.mxu0 0
  %761 = vmatprep.subr.bf16.mxu0 0
  %762 = vmatpush1.bf16.msra.mxu0 0
  %763 = vmatprep.mubr.bf16.mxu0 0
  %764 = vmatmul.mubr.bf16.gmra.mrb[0].mxu0 %v729
  %v765 = vpop.f32.mrb[0].mxu0
  %v766 = vadd.f32 %v722, %v765
  %v767 = vpop.f32.mrb[0].mxu0
  %v768 = vpop.f32.mrb[0].mxu0
  %v769 = vadd.f32 %v725, %v768
  %v770 = vpop.f32.mrb[0].mxu0
  %771 = vdwg.mxu0
  %v772 = vmul.f32 %v488, %v240
  %v773 = vmul.f32 %v491, %v241
  %v774 = vpack.c.bf16 %v673, %v672
  %v775 = vpack.c.bf16 %v773, %v772
  %v777 = vsel %vm587, %v774, 0
  %779 = vmatprep.subr.bf16.mxu0 0
  %780 = vmatpush1.bf16.msra.mxu0 %v775
  %781 = vmatprep.subr.bf16.mxu0 0
  %782 = vmatpush1.bf16.msra.mxu0 0
  %783 = vmatprep.subr.bf16.mxu0 0
  %784 = vmatpush1.bf16.msra.mxu0 0
  %785 = vmatprep.subr.bf16.mxu0 0
  %786 = vmatpush1.bf16.msra.mxu0 0
  %787 = vmatprep.subr.bf16.mxu0 0
  %788 = vmatpush1.bf16.msra.mxu0 0
  %789 = vmatprep.subr.bf16.mxu0 0
  %790 = vmatpush1.bf16.msra.mxu0 0
  %791 = vmatprep.subr.bf16.mxu0 0
  %792 = vmatpush1.bf16.msra.mxu0 0
  %793 = vmatprep.subr.bf16.mxu0 0
  %794 = vmatpush1.bf16.msra.mxu0 0
  %795 = vmatprep.subr.bf16.mxu0 0
  %796 = vmatpush1.bf16.msra.mxu0 0
  %797 = vmatprep.subr.bf16.mxu0 0
  %798 = vmatpush1.bf16.msra.mxu0 0
  %799 = vmatprep.subr.bf16.mxu0 0
  %800 = vmatpush1.bf16.msra.mxu0 0
  %801 = vmatprep.subr.bf16.mxu0 0
  %802 = vmatpush1.bf16.msra.mxu0 0
  %803 = vmatprep.subr.bf16.mxu0 0
  %804 = vmatpush1.bf16.msra.mxu0 0
  %805 = vmatprep.subr.bf16.mxu0 0
  %806 = vmatpush1.bf16.msra.mxu0 0
  %807 = vmatprep.subr.bf16.mxu0 0
  %808 = vmatpush1.bf16.msra.mxu0 0
  %809 = vmatprep.subr.bf16.mxu0 0
  %810 = vmatpush1.bf16.msra.mxu0 0
  %811 = vmatprep.mubr.bf16.mxu0 0
  %812 = vmatmul.mubr.bf16.gmra.mrb[0].mxu0 %v777
  %v813 = vpop.f32.mrb[0].mxu0
  %v814 = vadd.f32 0.0, %v813
  %v815 = vpop.f32.mrb[0].mxu0
  %v816 = vpop.f32.mrb[0].mxu0
  %v817 = vadd.f32 0.0, %v816
  %v818 = vpop.f32.mrb[0].mxu0
  %819 = vdwg.mxu0
  %v820 = vadd.f32 %v766, %v814
  %v821 = vadd.f32 %v769, %v817
  %v822 = vmul.f32 %v488, %v242
  %v823 = vmul.f32 %v491, %v243
  %v824 = vpack.c.bf16 %v675, %v674
  %v825 = vpack.c.bf16 %v823, %v822
  %v827 = vsel %vm587, %v824, 0
  %829 = vmatprep.subr.bf16.mxu0 0
  %830 = vmatpush1.bf16.msra.mxu0 %v825
  %831 = vmatprep.subr.bf16.mxu0 0
  %832 = vmatpush1.bf16.msra.mxu0 0
  %833 = vmatprep.subr.bf16.mxu0 0
  %834 = vmatpush1.bf16.msra.mxu0 0
  %835 = vmatprep.subr.bf16.mxu0 0
  %836 = vmatpush1.bf16.msra.mxu0 0
  %837 = vmatprep.subr.bf16.mxu0 0
  %838 = vmatpush1.bf16.msra.mxu0 0
  %839 = vmatprep.subr.bf16.mxu0 0
  %840 = vmatpush1.bf16.msra.mxu0 0
  %841 = vmatprep.subr.bf16.mxu0 0
  %842 = vmatpush1.bf16.msra.mxu0 0
  %843 = vmatprep.subr.bf16.mxu0 0
  %844 = vmatpush1.bf16.msra.mxu0 0
  %845 = vmatprep.subr.bf16.mxu0 0
  %846 = vmatpush1.bf16.msra.mxu0 0
  %847 = vmatprep.subr.bf16.mxu0 0
  %848 = vmatpush1.bf16.msra.mxu0 0
  %849 = vmatprep.subr.bf16.mxu0 0
  %850 = vmatpush1.bf16.msra.mxu0 0
  %851 = vmatprep.subr.bf16.mxu0 0
  %852 = vmatpush1.bf16.msra.mxu0 0
  %853 = vmatprep.subr.bf16.mxu0 0
  %854 = vmatpush1.bf16.msra.mxu0 0
  %855 = vmatprep.subr.bf16.mxu0 0
  %856 = vmatpush1.bf16.msra.mxu0 0
  %857 = vmatprep.subr.bf16.mxu0 0
  %858 = vmatpush1.bf16.msra.mxu0 0
  %859 = vmatprep.subr.bf16.mxu0 0
  %860 = vmatpush1.bf16.msra.mxu0 0
  %861 = vmatprep.mubr.bf16.mxu0 0
  %862 = vmatmul.mubr.bf16.gmra.mrb[0].mxu0 %v827
  %v863 = vpop.f32.mrb[0].mxu0
  %v864 = vadd.f32 0.0, %v863
  %v865 = vpop.f32.mrb[0].mxu0
  %v866 = vpop.f32.mrb[0].mxu0
  %v867 = vadd.f32 0.0, %v866
  %v868 = vpop.f32.mrb[0].mxu0
  %869 = vdwg.mxu0
  %v870 = vadd.f32 %v820, %v864
  %v871 = vadd.f32 %v821, %v867
  %v872 = vld [vmem:[%s13] sm:$0xf]
  %v873 = vld [vmem:[%s13 + $0x4] sm:$0xf]
  %v874 = vld [vmem:[%s13 + $0x8] sm:$0xf]
  %v875 = vld [vmem:[%s13 + $0xc] sm:$0xf]
  %v876 = vpack.c.bf16 %v871, %v870
  %v881 = vunpack.c.l.b16 %v872
  %v882 = vunpack.c.l.b16 %v873
  %v883 = vunpack.c.l.b16 %v874
  %v884 = vunpack.c.l.b16 %v875
  %v885 = vpack.c.b16 %v882, %v881
  %v886 = vpack.c.b16 %v884, %v883
  %v890 = vsel %vm254, %v876, 0
  %892 = vmatprep.subr.bf16.mxu0 0
  %893 = vmatpush1.bf16.msra.mxu0 %v885
  %894 = vmatprep.subr.bf16.mxu0 0
  %895 = vmatpush1.bf16.msra.mxu0 %v886
  %896 = vmatprep.subr.bf16.mxu0 0
  %897 = vmatpush1.bf16.msra.mxu0 0
  %898 = vmatprep.subr.bf16.mxu0 0
  %899 = vmatpush1.bf16.msra.mxu0 0
  %900 = vmatprep.subr.bf16.mxu0 0
  %901 = vmatpush1.bf16.msra.mxu0 0
  %902 = vmatprep.subr.bf16.mxu0 0
  %903 = vmatpush1.bf16.msra.mxu0 0
  %904 = vmatprep.subr.bf16.mxu0 0
  %905 = vmatpush1.bf16.msra.mxu0 0
  %906 = vmatprep.subr.bf16.mxu0 0
  %907 = vmatpush1.bf16.msra.mxu0 0
  %908 = vmatprep.subr.bf16.mxu0 0
  %909 = vmatpush1.bf16.msra.mxu0 0
  %910 = vmatprep.subr.bf16.mxu0 0
  %911 = vmatpush1.bf16.msra.mxu0 0
  %912 = vmatprep.subr.bf16.mxu0 0
  %913 = vmatpush1.bf16.msra.mxu0 0
  %914 = vmatprep.subr.bf16.mxu0 0
  %915 = vmatpush1.bf16.msra.mxu0 0
  %916 = vmatprep.subr.bf16.mxu0 0
  %917 = vmatpush1.bf16.msra.mxu0 0
  %918 = vmatprep.subr.bf16.mxu0 0
  %919 = vmatpush1.bf16.msra.mxu0 0
  %920 = vmatprep.subr.bf16.mxu0 0
  %921 = vmatpush1.bf16.msra.mxu0 0
  %922 = vmatprep.subr.bf16.mxu0 0
  %923 = vmatpush1.bf16.msra.mxu0 0
  %924 = vmatprep.mubr.bf16.mxu0 0
  %925 = vmatmul.mubr.bf16.gmra.mrb[0].mxu0 %v890
  %v926 = vpop.f32.mrb[0].mxu0
  %v927 = vadd.f32 0.0, %v926
  %v928 = vpop.f32.mrb[0].mxu0
  %v929 = vpop.f32.mrb[0].mxu0
  %v930 = vadd.f32 0.0, %v929
  %v931 = vpop.f32.mrb[0].mxu0
  %932 = vdwg.mxu0
  %v933 = vadd.f32 %v230, %v927
  %v934 = vadd.f32 %v233, %v930
  %v935 = vld [vmem:[%s14] sm:$0x1]
  %v937 = vlaneseq
  %v938 = vshrl.u32 %v937, 7
  %v939 = vsub.s32 0, %v938
  %v940 = vrot.slane %v935, %v939
  %v942 = vadd.f32 %v933, %v940
  %v943 = vadd.f32 %v934, %v940
  %v944 = vld [vmem:[%s15] sm:$0x1]
  %v945 = vld [vmem:[%s16] sm:$0x1]
  %v946 = vsel %vm254, %v942, 0.0
  %947 = vadd.xlane.f32.xlu0 %v946
  %v948 = vpop.xlane.xlu0 %947
  %v949 = vsel %vm254, %v943, 0.0
  %950 = vadd.xlane.f32.xlu0 %v949
  %v951 = vpop.xlane.xlu0 %950
  %v952 = vmul.f32 %v948, %v261
  %v953 = vmul.f32 %v951, %v261
  %v954 = vsub.f32 %v942, %v952
  %v955 = vsub.f32 %v943, %v953
  %v956 = vmul.f32 %v954, %v954
  %v957 = vmul.f32 %v955, %v955
  %v958 = vsel %vm254, %v956, 0.0
  %959 = vadd.xlane.f32.xlu0 %v958
  %v960 = vpop.xlane.xlu0 %959
  %v961 = vsel %vm254, %v957, 0.0
  %962 = vadd.xlane.f32.xlu0 %v961
  %v963 = vpop.xlane.xlu0 %962
  %v964 = vmul.f32 %v960, %v261
  %v965 = vmul.f32 %v963, %v261
  %v966 = vadd.f32 %v964, 1e-05
  %v967 = vadd.f32 %v965, 1e-05
  %v968 = vrsqrt.pop %v966
  %v969 = vrsqrt.pop %v967
  %v970 = vmul.f32 %v954, %v968
  %v971 = vmul.f32 %v955, %v969
  %v973 = vlaneseq
  %v974 = vshrl.u32 %v973, 7
  %v975 = vsub.s32 0, %v974
  %v976 = vrot.slane %v944, %v975
  %v978 = vmul.f32 %v970, %v976
  %v979 = vmul.f32 %v971, %v976
  %v981 = vlaneseq
  %v982 = vshrl.u32 %v981, 7
  %v983 = vsub.s32 0, %v982
  %v984 = vrot.slane %v945, %v983
  %v986 = vadd.f32 %v978, %v984
  %v987 = vadd.f32 %v979, %v984
  %v988 = vld [vmem:[%s17] sm:$0xf]
  %v989 = vld [vmem:[%s17 + $0x4] sm:$0xf]
  %v990 = vld [vmem:[%s17 + $0x8] sm:$0xf]
  %v991 = vld [vmem:[%s17 + $0xc] sm:$0xf]
  %v992 = vpack.c.bf16 %v987, %v986
  %v993 = vld [vmem:[%s18] sm:$0x1]
  %v995 = vlaneseq
  %v996 = vshrl.u32 %v995, 7
  %v997 = vsub.s32 0, %v996
  %v998 = vrot.slane %v993, %v997
  %v1004 = vunpack.c.l.b16 %v988
  %v1005 = vunpack.c.l.b16 %v989
  %v1006 = vunpack.c.l.b16 %v990
  %v1007 = vunpack.c.l.b16 %v991
  %v1008 = vpack.c.b16 %v1005, %v1004
  %v1009 = vpack.c.b16 %v1007, %v1006
  %v1013 = vsel %vm254, %v992, 0
  %1015 = vmatprep.subr.bf16.mxu0 0
  %1016 = vmatpush1.bf16.msra.mxu0 %v1008
  %1017 = vmatprep.subr.bf16.mxu0 0
  %1018 = vmatpush1.bf16.msra.mxu0 %v1009
  %1019 = vmatprep.subr.bf16.mxu0 0
  %1020 = vmatpush1.bf16.msra.mxu0 0
  %1021 = vmatprep.subr.bf16.mxu0 0
  %1022 = vmatpush1.bf16.msra.mxu0 0
  %1023 = vmatprep.subr.bf16.mxu0 0
  %1024 = vmatpush1.bf16.msra.mxu0 0
  %1025 = vmatprep.subr.bf16.mxu0 0
  %1026 = vmatpush1.bf16.msra.mxu0 0
  %1027 = vmatprep.subr.bf16.mxu0 0
  %1028 = vmatpush1.bf16.msra.mxu0 0
  %1029 = vmatprep.subr.bf16.mxu0 0
  %1030 = vmatpush1.bf16.msra.mxu0 0
  %1031 = vmatprep.subr.bf16.mxu0 0
  %1032 = vmatpush1.bf16.msra.mxu0 0
  %1033 = vmatprep.subr.bf16.mxu0 0
  %1034 = vmatpush1.bf16.msra.mxu0 0
  %1035 = vmatprep.subr.bf16.mxu0 0
  %1036 = vmatpush1.bf16.msra.mxu0 0
  %1037 = vmatprep.subr.bf16.mxu0 0
  %1038 = vmatpush1.bf16.msra.mxu0 0
  %1039 = vmatprep.subr.bf16.mxu0 0
  %1040 = vmatpush1.bf16.msra.mxu0 0
  %1041 = vmatprep.subr.bf16.mxu0 0
  %1042 = vmatpush1.bf16.msra.mxu0 0
  %1043 = vmatprep.subr.bf16.mxu0 0
  %1044 = vmatpush1.bf16.msra.mxu0 0
  %1045 = vmatprep.subr.bf16.mxu0 0
  %1046 = vmatpush1.bf16.msra.mxu0 0
  %1047 = vmatprep.mubr.bf16.mxu0 0
  %1048 = vmatmul.mubr.bf16.gmra.mrb[0].mxu0 %v1013
  %v1049 = vpop.f32.mrb[0].mxu0
  %v1050 = vadd.f32 %v998, %v1049
  %v1051 = vpop.f32.mrb[0].mxu0
  %v1052 = vpop.f32.mrb[0].mxu0
  %v1053 = vadd.f32 %v998, %v1052
  %v1054 = vpop.f32.mrb[0].mxu0
  %1055 = vdwg.mxu0
  %v1056 = vmul.f32 %v1050, 0.5
  %v1057 = vmul.f32 %v1053, 0.5
  %v1058 = vmul.f32 %v1050, 0.044715
  %v1059 = vmul.f32 %v1053, 0.044715
  %v1060 = vmul.f32 %v1058, %v1050
  %v1061 = vmul.f32 %v1059, %v1053
  %v1062 = vmul.f32 %v1060, %v1050
  %v1063 = vmul.f32 %v1061, %v1053
  %v1064 = vadd.f32 %v1050, %v1062
  %v1065 = vadd.f32 %v1053, %v1063
  %v1066 = vmul.f32 %v1064, 0.7978846
  %v1067 = vmul.f32 %v1065, 0.7978846
  %v1068 = vtanh.pop %v1066
  %v1069 = vtanh.pop %v1067
  %v1070 = vadd.f32 %v1068, 1.0
  %v1071 = vadd.f32 %v1069, 1.0
  %v1072 = vmul.f32 %v1056, %v1070
  %v1073 = vmul.f32 %v1057, %v1071
  %v1074 = vld [vmem:[%s19] sm:$0xf]
  %v1075 = vld [vmem:[%s19 + $0x4] sm:$0xf]
  %v1076 = vld [vmem:[%s19 + $0x8] sm:$0xf]
  %v1077 = vld [vmem:[%s19 + $0xc] sm:$0xf]
  %v1078 = vld [vmem:[%s19 + $0x10] sm:$0xf]
  %v1079 = vld [vmem:[%s19 + $0x14] sm:$0xf]
  %v1080 = vld [vmem:[%s19 + $0x18] sm:$0xf]
  %v1081 = vld [vmem:[%s19 + $0x1c] sm:$0xf]
  %v1082 = vld [vmem:[%s19 + $0x20] sm:$0xf]
  %v1083 = vld [vmem:[%s19 + $0x24] sm:$0xf]
  %v1084 = vld [vmem:[%s19 + $0x28] sm:$0xf]
  %v1085 = vld [vmem:[%s19 + $0x2c] sm:$0xf]
  %v1086 = vld [vmem:[%s19 + $0x30] sm:$0xf]
  %v1087 = vld [vmem:[%s19 + $0x34] sm:$0xf]
  %v1088 = vld [vmem:[%s19 + $0x38] sm:$0xf]
  %v1089 = vld [vmem:[%s19 + $0x3c] sm:$0xf]
  %v1090 = vpack.c.bf16 %v1073, %v1072
  %v1107 = vunpack.c.l.b16 %v1074
  %v1108 = vunpack.c.l.b16 %v1075
  %v1109 = vunpack.c.l.b16 %v1076
  %v1110 = vunpack.c.l.b16 %v1077
  %v1111 = vunpack.c.l.b16 %v1078
  %v1112 = vunpack.c.l.b16 %v1079
  %v1113 = vunpack.c.l.b16 %v1080
  %v1114 = vunpack.c.l.b16 %v1081
  %v1115 = vunpack.c.l.b16 %v1082
  %v1116 = vunpack.c.l.b16 %v1083
  %v1117 = vunpack.c.l.b16 %v1084
  %v1118 = vunpack.c.l.b16 %v1085
  %v1119 = vunpack.c.l.b16 %v1086
  %v1120 = vunpack.c.l.b16 %v1087
  %v1121 = vunpack.c.l.b16 %v1088
  %v1122 = vunpack.c.l.b16 %v1089
  %v1123 = vpack.c.b16 %v1108, %v1107
  %v1124 = vpack.c.b16 %v1110, %v1109
  %v1125 = vpack.c.b16 %v1112, %v1111
  %v1126 = vpack.c.b16 %v1114, %v1113
  %v1127 = vpack.c.b16 %v1116, %v1115
  %v1128 = vpack.c.b16 %v1118, %v1117
  %v1129 = vpack.c.b16 %v1120, %v1119
  %v1130 = vpack.c.b16 %v1122, %v1121
  %1139 = vmatprep.subr.bf16.mxu0 0
  %1140 = vmatpush1.bf16.msra.mxu0 %v1123
  %1141 = vmatprep.subr.bf16.mxu0 0
  %1142 = vmatpush1.bf16.msra.mxu0 %v1124
  %1143 = vmatprep.subr.bf16.mxu0 0
  %1144 = vmatpush1.bf16.msra.mxu0 %v1125
  %1145 = vmatprep.subr.bf16.mxu0 0
  %1146 = vmatpush1.bf16.msra.mxu0 %v1126
  %1147 = vmatprep.subr.bf16.mxu0 0
  %1148 = vmatpush1.bf16.msra.mxu0 %v1127
  %1149 = vmatprep.subr.bf16.mxu0 0
  %1150 = vmatpush1.bf16.msra.mxu0 %v1128
  %1151 = vmatprep.subr.bf16.mxu0 0
  %1152 = vmatpush1.bf16.msra.mxu0 %v1129
  %1153 = vmatprep.subr.bf16.mxu0 0
  %1154 = vmatpush1.bf16.msra.mxu0 %v1130
  %1155 = vmatprep.subr.bf16.mxu0 0
  %1156 = vmatpush1.bf16.msra.mxu0 0
  %1157 = vmatprep.subr.bf16.mxu0 0
  %1158 = vmatpush1.bf16.msra.mxu0 0
  %1159 = vmatprep.subr.bf16.mxu0 0
  %1160 = vmatpush1.bf16.msra.mxu0 0
  %1161 = vmatprep.subr.bf16.mxu0 0
  %1162 = vmatpush1.bf16.msra.mxu0 0
  %1163 = vmatprep.subr.bf16.mxu0 0
  %1164 = vmatpush1.bf16.msra.mxu0 0
  %1165 = vmatprep.subr.bf16.mxu0 0
  %1166 = vmatpush1.bf16.msra.mxu0 0
  %1167 = vmatprep.subr.bf16.mxu0 0
  %1168 = vmatpush1.bf16.msra.mxu0 0
  %1169 = vmatprep.subr.bf16.mxu0 0
  %1170 = vmatpush1.bf16.msra.mxu0 0
  %1171 = vmatprep.mubr.bf16.mxu0 0
  %1172 = vmatmul.mubr.bf16.gmra.mrb[0].mxu0 %v1090
  %v1173 = vpop.f32.mrb[0].mxu0
  %v1174 = vadd.f32 0.0, %v1173
  %v1175 = vpop.f32.mrb[0].mxu0
  %v1176 = vpop.f32.mrb[0].mxu0
  %v1177 = vadd.f32 0.0, %v1176
  %v1178 = vpop.f32.mrb[0].mxu0
  %1179 = vdwg.mxu0
  %v1180 = vadd.f32 %v942, %v1174
  %v1181 = vadd.f32 %v943, %v1177
  %v1182 = vld [vmem:[%s20] sm:$0x1]
  %v1184 = vlaneseq
  %v1185 = vshrl.u32 %v1184, 7
  %v1186 = vsub.s32 0, %v1185
  %v1187 = vrot.slane %v1182, %v1186
  %v1189 = vadd.f32 %v1180, %v1187
  %v1190 = vadd.f32 %v1181, %v1187
  %s1191 = scalar_lea.vmem %s5, 1
  %v1192 = vld [vmem:[%s1191] sm:$0x1]
  %s1193 = scalar_lea.vmem %s6, 1
  %v1194 = vld [vmem:[%s1193] sm:$0x1]
  %v1195 = vsel %vm254, %v1189, 0.0
  %1196 = vadd.xlane.f32.xlu0 %v1195
  %v1197 = vpop.xlane.xlu0 %1196
  %v1198 = vsel %vm254, %v1190, 0.0
  %1199 = vadd.xlane.f32.xlu0 %v1198
  %v1200 = vpop.xlane.xlu0 %1199
  %v1201 = vmul.f32 %v1197, %v261
  %v1202 = vmul.f32 %v1200, %v261
  %v1203 = vsub.f32 %v1189, %v1201
  %v1204 = vsub.f32 %v1190, %v1202
  %v1205 = vmul.f32 %v1203, %v1203
  %v1206 = vmul.f32 %v1204, %v1204
  %v1207 = vsel %vm254, %v1205, 0.0
  %1208 = vadd.xlane.f32.xlu0 %v1207
  %v1209 = vpop.xlane.xlu0 %1208
  %v1210 = vsel %vm254, %v1206, 0.0
  %1211 = vadd.xlane.f32.xlu0 %v1210
  %v1212 = vpop.xlane.xlu0 %1211
  %v1213 = vmul.f32 %v1209, %v261
  %v1214 = vmul.f32 %v1212, %v261
  %v1215 = vadd.f32 %v1213, 1e-05
  %v1216 = vadd.f32 %v1214, 1e-05
  %v1217 = vrsqrt.pop %v1215
  %v1218 = vrsqrt.pop %v1216
  %v1219 = vmul.f32 %v1203, %v1217
  %v1220 = vmul.f32 %v1204, %v1218
  %v1222 = vlaneseq
  %v1223 = vshrl.u32 %v1222, 7
  %v1224 = vsub.s32 0, %v1223
  %v1225 = vrot.slane %v1192, %v1224
  %v1227 = vmul.f32 %v1219, %v1225
  %v1228 = vmul.f32 %v1220, %v1225
  %v1230 = vlaneseq
  %v1231 = vshrl.u32 %v1230, 7
  %v1232 = vsub.s32 0, %v1231
  %v1233 = vrot.slane %v1194, %v1232
  %v1235 = vadd.f32 %v1227, %v1233
  %v1236 = vadd.f32 %v1228, %v1233
  %s1237 = scalar_lea.vmem %s7, 16
  %v1238 = vld [vmem:[%s1237] sm:$0xf]
  %v1239 = vld [vmem:[%s1237 + $0x4] sm:$0xf]
  %v1240 = vld [vmem:[%s1237 + $0x8] sm:$0xf]
  %v1241 = vld [vmem:[%s1237 + $0xc] sm:$0xf]
  %v1242 = vpack.c.bf16 %v1236, %v1235
  %s1243 = scalar_lea.vmem %s8, 1
  %v1244 = vld [vmem:[%s1243] sm:$0x1]
  %v1246 = vlaneseq
  %v1247 = vshrl.u32 %v1246, 7
  %v1248 = vsub.s32 0, %v1247
  %v1249 = vrot.slane %v1244, %v1248
  %v1255 = vunpack.c.l.b16 %v1238
  %v1256 = vunpack.c.l.b16 %v1239
  %v1257 = vunpack.c.l.b16 %v1240
  %v1258 = vunpack.c.l.b16 %v1241
  %v1259 = vpack.c.b16 %v1256, %v1255
  %v1260 = vpack.c.b16 %v1258, %v1257
  %v1264 = vsel %vm254, %v1242, 0
  %1266 = vmatprep.subr.bf16.mxu0 0
  %1267 = vmatpush1.bf16.msra.mxu0 %v1259
  %1268 = vmatprep.subr.bf16.mxu0 0
  %1269 = vmatpush1.bf16.msra.mxu0 %v1260
  %1270 = vmatprep.subr.bf16.mxu0 0
  %1271 = vmatpush1.bf16.msra.mxu0 0
  %1272 = vmatprep.subr.bf16.mxu0 0
  %1273 = vmatpush1.bf16.msra.mxu0 0
  %1274 = vmatprep.subr.bf16.mxu0 0
  %1275 = vmatpush1.bf16.msra.mxu0 0
  %1276 = vmatprep.subr.bf16.mxu0 0
  %1277 = vmatpush1.bf16.msra.mxu0 0
  %1278 = vmatprep.subr.bf16.mxu0 0
  %1279 = vmatpush1.bf16.msra.mxu0 0
  %1280 = vmatprep.subr.bf16.mxu0 0
  %1281 = vmatpush1.bf16.msra.mxu0 0
  %1282 = vmatprep.subr.bf16.mxu0 0
  %1283 = vmatpush1.bf16.msra.mxu0 0
  %1284 = vmatprep.subr.bf16.mxu0 0
  %1285 = vmatpush1.bf16.msra.mxu0 0
  %1286 = vmatprep.subr.bf16.mxu0 0
  %1287 = vmatpush1.bf16.msra.mxu0 0
  %1288 = vmatprep.subr.bf16.mxu0 0
  %1289 = vmatpush1.bf16.msra.mxu0 0
  %1290 = vmatprep.subr.bf16.mxu0 0
  %1291 = vmatpush1.bf16.msra.mxu0 0
  %1292 = vmatprep.subr.bf16.mxu0 0
  %1293 = vmatpush1.bf16.msra.mxu0 0
  %1294 = vmatprep.subr.bf16.mxu0 0
  %1295 = vmatpush1.bf16.msra.mxu0 0
  %1296 = vmatprep.subr.bf16.mxu0 0
  %1297 = vmatpush1.bf16.msra.mxu0 0
  %1298 = vmatprep.mubr.bf16.mxu0 0
  %1299 = vmatmul.mubr.bf16.gmra.mrb[0].mxu0 %v1264
  %v1300 = vpop.f32.mrb[0].mxu0
  %v1301 = vadd.f32 %v1249, %v1300
  %v1302 = vpop.f32.mrb[0].mxu0
  %v1303 = vpop.f32.mrb[0].mxu0
  %v1304 = vadd.f32 %v1249, %v1303
  %v1305 = vpop.f32.mrb[0].mxu0
  %1306 = vdwg.mxu0
  %s1307 = scalar_lea.vmem %s9, 16
  %v1308 = vld [vmem:[%s1307] sm:$0xf]
  %v1309 = vld [vmem:[%s1307 + $0x4] sm:$0xf]
  %v1310 = vld [vmem:[%s1307 + $0x8] sm:$0xf]
  %v1311 = vld [vmem:[%s1307 + $0xc] sm:$0xf]
  %s1312 = scalar_lea.vmem %s10, 1
  %v1313 = vld [vmem:[%s1312] sm:$0x1]
  %v1315 = vlaneseq
  %v1316 = vshrl.u32 %v1315, 7
  %v1317 = vsub.s32 0, %v1316
  %v1318 = vrot.slane %v1313, %v1317
  %v1324 = vunpack.c.l.b16 %v1308
  %v1325 = vunpack.c.l.b16 %v1309
  %v1326 = vunpack.c.l.b16 %v1310
  %v1327 = vunpack.c.l.b16 %v1311
  %v1328 = vpack.c.b16 %v1325, %v1324
  %v1329 = vpack.c.b16 %v1327, %v1326
  %1332 = vmatprep.subr.bf16.mxu0 0
  %1333 = vmatpush1.bf16.msra.mxu0 %v1328
  %1334 = vmatprep.subr.bf16.mxu0 0
  %1335 = vmatpush1.bf16.msra.mxu0 %v1329
  %1336 = vmatprep.subr.bf16.mxu0 0
  %1337 = vmatpush1.bf16.msra.mxu0 0
  %1338 = vmatprep.subr.bf16.mxu0 0
  %1339 = vmatpush1.bf16.msra.mxu0 0
  %1340 = vmatprep.subr.bf16.mxu0 0
  %1341 = vmatpush1.bf16.msra.mxu0 0
  %1342 = vmatprep.subr.bf16.mxu0 0
  %1343 = vmatpush1.bf16.msra.mxu0 0
  %1344 = vmatprep.subr.bf16.mxu0 0
  %1345 = vmatpush1.bf16.msra.mxu0 0
  %1346 = vmatprep.subr.bf16.mxu0 0
  %1347 = vmatpush1.bf16.msra.mxu0 0
  %1348 = vmatprep.subr.bf16.mxu0 0
  %1349 = vmatpush1.bf16.msra.mxu0 0
  %1350 = vmatprep.subr.bf16.mxu0 0
  %1351 = vmatpush1.bf16.msra.mxu0 0
  %1352 = vmatprep.subr.bf16.mxu0 0
  %1353 = vmatpush1.bf16.msra.mxu0 0
  %1354 = vmatprep.subr.bf16.mxu0 0
  %1355 = vmatpush1.bf16.msra.mxu0 0
  %1356 = vmatprep.subr.bf16.mxu0 0
  %1357 = vmatpush1.bf16.msra.mxu0 0
  %1358 = vmatprep.subr.bf16.mxu0 0
  %1359 = vmatpush1.bf16.msra.mxu0 0
  %1360 = vmatprep.subr.bf16.mxu0 0
  %1361 = vmatpush1.bf16.msra.mxu0 0
  %1362 = vmatprep.subr.bf16.mxu0 0
  %1363 = vmatpush1.bf16.msra.mxu0 0
  %1364 = vmatprep.mubr.bf16.mxu0 0
  %1365 = vmatmul.mubr.bf16.gmra.mrb[0].mxu0 %v1264
  %v1366 = vpop.f32.mrb[0].mxu0
  %v1367 = vadd.f32 %v1318, %v1366
  %v1368 = vpop.f32.mrb[0].mxu0
  %v1369 = vpop.f32.mrb[0].mxu0
  %v1370 = vadd.f32 %v1318, %v1369
  %v1371 = vpop.f32.mrb[0].mxu0
  %1372 = vdwg.mxu0
  %s1373 = scalar_lea.vmem %s11, 16
  %v1374 = vld [vmem:[%s1373] sm:$0xf]
  %v1375 = vld [vmem:[%s1373 + $0x4] sm:$0xf]
  %v1376 = vld [vmem:[%s1373 + $0x8] sm:$0xf]
  %v1377 = vld [vmem:[%s1373 + $0xc] sm:$0xf]
  %s1378 = scalar_lea.vmem %s12, 1
  %v1379 = vld [vmem:[%s1378] sm:$0x1]
  %v1381 = vlaneseq
  %v1382 = vshrl.u32 %v1381, 7
  %v1383 = vsub.s32 0, %v1382
  %v1384 = vrot.slane %v1379, %v1383
  %v1390 = vunpack.c.l.b16 %v1374
  %v1391 = vunpack.c.l.b16 %v1375
  %v1392 = vunpack.c.l.b16 %v1376
  %v1393 = vunpack.c.l.b16 %v1377
  %v1394 = vpack.c.b16 %v1391, %v1390
  %v1395 = vpack.c.b16 %v1393, %v1392
  %1398 = vmatprep.subr.bf16.mxu0 0
  %1399 = vmatpush1.bf16.msra.mxu0 %v1394
  %1400 = vmatprep.subr.bf16.mxu0 0
  %1401 = vmatpush1.bf16.msra.mxu0 %v1395
  %1402 = vmatprep.subr.bf16.mxu0 0
  %1403 = vmatpush1.bf16.msra.mxu0 0
  %1404 = vmatprep.subr.bf16.mxu0 0
  %1405 = vmatpush1.bf16.msra.mxu0 0
  %1406 = vmatprep.subr.bf16.mxu0 0
  %1407 = vmatpush1.bf16.msra.mxu0 0
  %1408 = vmatprep.subr.bf16.mxu0 0
  %1409 = vmatpush1.bf16.msra.mxu0 0
  %1410 = vmatprep.subr.bf16.mxu0 0
  %1411 = vmatpush1.bf16.msra.mxu0 0
  %1412 = vmatprep.subr.bf16.mxu0 0
  %1413 = vmatpush1.bf16.msra.mxu0 0
  %1414 = vmatprep.subr.bf16.mxu0 0
  %1415 = vmatpush1.bf16.msra.mxu0 0
  %1416 = vmatprep.subr.bf16.mxu0 0
  %1417 = vmatpush1.bf16.msra.mxu0 0
  %1418 = vmatprep.subr.bf16.mxu0 0
  %1419 = vmatpush1.bf16.msra.mxu0 0
  %1420 = vmatprep.subr.bf16.mxu0 0
  %1421 = vmatpush1.bf16.msra.mxu0 0
  %1422 = vmatprep.subr.bf16.mxu0 0
  %1423 = vmatpush1.bf16.msra.mxu0 0
  %1424 = vmatprep.subr.bf16.mxu0 0
  %1425 = vmatpush1.bf16.msra.mxu0 0
  %1426 = vmatprep.subr.bf16.mxu0 0
  %1427 = vmatpush1.bf16.msra.mxu0 0
  %1428 = vmatprep.subr.bf16.mxu0 0
  %1429 = vmatpush1.bf16.msra.mxu0 0
  %1430 = vmatprep.mubr.bf16.mxu0 0
  %1431 = vmatmul.mubr.bf16.gmra.mrb[0].mxu0 %v1264
  %v1432 = vpop.f32.mrb[0].mxu0
  %v1433 = vadd.f32 %v1384, %v1432
  %v1434 = vpop.f32.mrb[0].mxu0
  %v1435 = vpop.f32.mrb[0].mxu0
  %v1436 = vadd.f32 %v1384, %v1435
  %v1437 = vpop.f32.mrb[0].mxu0
  %1438 = vdwg.mxu0
  %v1439 = vmul.f32 %v1301, %v236
  %v1440 = vmul.f32 %v1304, %v237
  %v1441 = vmul.f32 %v1301, %v238
  %v1442 = vmul.f32 %v1304, %v239
  %v1443 = vmul.f32 %v1301, %v240
  %v1444 = vmul.f32 %v1304, %v241
  %v1445 = vmul.f32 %v1301, %v242
  %v1446 = vmul.f32 %v1304, %v243
  %v1447 = vpack.c.bf16 %v1440, %v1439
  %v1448 = vpack.c.bf16 %v1442, %v1441
  %v1449 = vpack.c.bf16 %v1444, %v1443
  %v1450 = vpack.c.bf16 %v1446, %v1445
  %v1451 = vpack.c.bf16 %v1370, %v1367
  %v1453 = vsel %vm254, %v1447, 0
  %v1456 = vsel %vm254, %v1448, 0
  %v1459 = vsel %vm254, %v1449, 0
  %v1462 = vsel %vm254, %v1450, 0
  %v1465 = vsel %vm254, %v1451, 0
  %1467 = vmatprep.subr.bf16.mxu0 0
  %1468 = vmatpush1.bf16.xpose.msra.mxu0 %v1465
  %1469 = vmatprep.subr.bf16.mxu0 0
  %1470 = vmatpush1.bf16.xpose.msra.mxu0 0
  %1471 = vmatprep.subr.bf16.mxu0 0
  %1472 = vmatpush1.bf16.xpose.msra.mxu0 0
  %1473 = vmatprep.subr.bf16.mxu0 0
  %1474 = vmatpush1.bf16.xpose.msra.mxu0 0
  %1475 = vmatprep.subr.bf16.mxu0 0
  %1476 = vmatpush1.bf16.xpose.msra.mxu0 0
  %1477 = vmatprep.subr.bf16.mxu0 0
  %1478 = vmatpush1.bf16.xpose.msra.mxu0 0
  %1479 = vmatprep.subr.bf16.mxu0 0
  %1480 = vmatpush1.bf16.xpose.msra.mxu0 0
  %1481 = vmatprep.subr.bf16.mxu0 0
  %1482 = vmatpush1.bf16.xpose.msra.mxu0 0
  %1483 = vmatprep.subr.bf16.mxu0 0
  %1484 = vmatpush1.bf16.xpose.msra.mxu0 0
  %1485 = vmatprep.subr.bf16.mxu0 0
  %1486 = vmatpush1.bf16.xpose.msra.mxu0 0
  %1487 = vmatprep.subr.bf16.mxu0 0
  %1488 = vmatpush1.bf16.xpose.msra.mxu0 0
  %1489 = vmatprep.subr.bf16.mxu0 0
  %1490 = vmatpush1.bf16.xpose.msra.mxu0 0
  %1491 = vmatprep.subr.bf16.mxu0 0
  %1492 = vmatpush1.bf16.xpose.msra.mxu0 0
  %1493 = vmatprep.subr.bf16.mxu0 0
  %1494 = vmatpush1.bf16.xpose.msra.mxu0 0
  %1495 = vmatprep.subr.bf16.mxu0 0
  %1496 = vmatpush1.bf16.xpose.msra.mxu0 0
  %1497 = vmatprep.subr.bf16.mxu0 0
  %1498 = vmatpush1.bf16.xpose.msra.mxu0 0
  %1499 = vmatprep.mubr.bf16.mxu0 0
  %1500 = vmatmul.mubr.bf16.gmra.mrb[0].mxu0 %v1453
  %v1501 = vpop.f32.mrb[0].mxu0
  %v1502 = vadd.f32 %v244, %v1501
  %v1503 = vpop.f32.mrb[0].mxu0
  %v1504 = vpop.f32.mrb[0].mxu0
  %v1505 = vadd.f32 %v245, %v1504
  %v1506 = vpop.f32.mrb[0].mxu0
  %1507 = vmatprep.mubr.bf16.mxu0 0
  %1508 = vmatmul.mubr.bf16.gmra.mrb[0].mxu0 %v1456
  %v1509 = vpop.f32.mrb[0].mxu0
  %v1510 = vadd.f32 %v246, %v1509
  %v1511 = vpop.f32.mrb[0].mxu0
  %v1512 = vpop.f32.mrb[0].mxu0
  %v1513 = vadd.f32 %v247, %v1512
  %v1514 = vpop.f32.mrb[0].mxu0
  %1515 = vmatprep.mubr.bf16.mxu0 0
  %1516 = vmatmul.mubr.bf16.gmra.mrb[0].mxu0 %v1459
  %v1517 = vpop.f32.mrb[0].mxu0
  %v1518 = vadd.f32 %v248, %v1517
  %v1519 = vpop.f32.mrb[0].mxu0
  %v1520 = vpop.f32.mrb[0].mxu0
  %v1521 = vadd.f32 %v249, %v1520
  %v1522 = vpop.f32.mrb[0].mxu0
  %1523 = vmatprep.mubr.bf16.mxu0 0
  %1524 = vmatmul.mubr.bf16.gmra.mrb[0].mxu0 %v1462
  %v1525 = vpop.f32.mrb[0].mxu0
  %v1526 = vadd.f32 %v250, %v1525
  %v1527 = vpop.f32.mrb[0].mxu0
  %v1528 = vpop.f32.mrb[0].mxu0
  %v1529 = vadd.f32 %v251, %v1528
  %v1530 = vpop.f32.mrb[0].mxu0
  %1531 = vdwg.mxu0
  %v1532 = vsel %vm587, %v1502, -inf
  %1533 = vmax.xlane.f32.xlu0 %v1532
  %v1534 = vpop.xlane.xlu0 %1533
  %v1535 = vsel %vm587, %v1505, -inf
  %1536 = vmax.xlane.f32.xlu0 %v1535
  %v1537 = vpop.xlane.xlu0 %1536
  %v1538 = vsel %vm587, %v1510, -inf
  %1539 = vmax.xlane.f32.xlu0 %v1538
  %v1540 = vpop.xlane.xlu0 %1539
  %v1541 = vsel %vm587, %v1513, -inf
  %1542 = vmax.xlane.f32.xlu0 %v1541
  %v1543 = vpop.xlane.xlu0 %1542
  %v1544 = vsel %vm587, %v1518, -inf
  %1545 = vmax.xlane.f32.xlu0 %v1544
  %v1546 = vpop.xlane.xlu0 %1545
  %v1547 = vsel %vm587, %v1521, -inf
  %1548 = vmax.xlane.f32.xlu0 %v1547
  %v1549 = vpop.xlane.xlu0 %1548
  %v1550 = vsel %vm587, %v1526, -inf
  %1551 = vmax.xlane.f32.xlu0 %v1550
  %v1552 = vpop.xlane.xlu0 %1551
  %v1553 = vsel %vm587, %v1529, -inf
  %1554 = vmax.xlane.f32.xlu0 %v1553
  %v1555 = vpop.xlane.xlu0 %1554
  %v1556 = vsub.f32 %v1502, %v1534
  %v1557 = vsub.f32 %v1505, %v1537
  %v1558 = vsub.f32 %v1510, %v1540
  %v1559 = vsub.f32 %v1513, %v1543
  %v1560 = vsub.f32 %v1518, %v1546
  %v1561 = vsub.f32 %v1521, %v1549
  %v1562 = vsub.f32 %v1526, %v1552
  %v1563 = vsub.f32 %v1529, %v1555
  %v1564 = vmul.f32 %v1556, 1.442695
  %v1565 = vpow.pop %v1564
  %v1566 = vmul.f32 %v1557, 1.442695
  %v1567 = vpow.pop %v1566
  %v1568 = vmul.f32 %v1558, 1.442695
  %v1569 = vpow.pop %v1568
  %v1570 = vmul.f32 %v1559, 1.442695
  %v1571 = vpow.pop %v1570
  %v1572 = vmul.f32 %v1560, 1.442695
  %v1573 = vpow.pop %v1572
  %v1574 = vmul.f32 %v1561, 1.442695
  %v1575 = vpow.pop %v1574
  %v1576 = vmul.f32 %v1562, 1.442695
  %v1577 = vpow.pop %v1576
  %v1578 = vmul.f32 %v1563, 1.442695
  %v1579 = vpow.pop %v1578
  %v1580 = vsel %vm587, %v1565, 0.0
  %1581 = vadd.xlane.f32.xlu0 %v1580
  %v1582 = vpop.xlane.xlu0 %1581
  %v1583 = vsel %vm587, %v1567, 0.0
  %1584 = vadd.xlane.f32.xlu0 %v1583
  %v1585 = vpop.xlane.xlu0 %1584
  %v1586 = vsel %vm587, %v1569, 0.0
  %1587 = vadd.xlane.f32.xlu0 %v1586
  %v1588 = vpop.xlane.xlu0 %1587
  %v1589 = vsel %vm587, %v1571, 0.0
  %1590 = vadd.xlane.f32.xlu0 %v1589
  %v1591 = vpop.xlane.xlu0 %1590
  %v1592 = vsel %vm587, %v1573, 0.0
  %1593 = vadd.xlane.f32.xlu0 %v1592
  %v1594 = vpop.xlane.xlu0 %1593
  %v1595 = vsel %vm587, %v1575, 0.0
  %1596 = vadd.xlane.f32.xlu0 %v1595
  %v1597 = vpop.xlane.xlu0 %1596
  %v1598 = vsel %vm587, %v1577, 0.0
  %1599 = vadd.xlane.f32.xlu0 %v1598
  %v1600 = vpop.xlane.xlu0 %1599
  %v1601 = vsel %vm587, %v1579, 0.0
  %1602 = vadd.xlane.f32.xlu0 %v1601
  %v1603 = vpop.xlane.xlu0 %1602
  %v1604 = vrcp.pop %v1582
  %v1605 = vrcp.pop %v1585
  %v1606 = vrcp.pop %v1588
  %v1607 = vrcp.pop %v1591
  %v1608 = vrcp.pop %v1594
  %v1609 = vrcp.pop %v1597
  %v1610 = vrcp.pop %v1600
  %v1611 = vrcp.pop %v1603
  %v1612 = vmul.f32 %v1565, %v1604
  %v1613 = vmul.f32 %v1567, %v1605
  %v1614 = vmul.f32 %v1569, %v1606
  %v1615 = vmul.f32 %v1571, %v1607
  %v1616 = vmul.f32 %v1573, %v1608
  %v1617 = vmul.f32 %v1575, %v1609
  %v1618 = vmul.f32 %v1577, %v1610
  %v1619 = vmul.f32 %v1579, %v1611
  %v1620 = vmul.f32 %v1433, %v236
  %v1621 = vmul.f32 %v1436, %v237
  %v1622 = vpack.c.bf16 %v1613, %v1612
  %v1623 = vpack.c.bf16 %v1621, %v1620
  %v1624 = vmul.f32 %v1433, %v238
  %v1625 = vmul.f32 %v1436, %v239
  %v1626 = vpack.c.bf16 %v1615, %v1614
  %v1627 = vpack.c.bf16 %v1625, %v1624
  %v1629 = vsel %vm587, %v1626, 0
  %1631 = vmatprep.subr.bf16.mxu0 0
  %1632 = vmatpush1.bf16.msra.mxu0 %v1627
  %1633 = vmatprep.subr.bf16.mxu0 0
  %1634 = vmatpush1.bf16.msra.mxu0 0
  %1635 = vmatprep.subr.bf16.mxu0 0
  %1636 = vmatpush1.bf16.msra.mxu0 0
  %1637 = vmatprep.subr.bf16.mxu0 0
  %1638 = vmatpush1.bf16.msra.mxu0 0
  %1639 = vmatprep.subr.bf16.mxu0 0
  %1640 = vmatpush1.bf16.msra.mxu0 0
  %1641 = vmatprep.subr.bf16.mxu0 0
  %1642 = vmatpush1.bf16.msra.mxu0 0
  %1643 = vmatprep.subr.bf16.mxu0 0
  %1644 = vmatpush1.bf16.msra.mxu0 0
  %1645 = vmatprep.subr.bf16.mxu0 0
  %1646 = vmatpush1.bf16.msra.mxu0 0
  %1647 = vmatprep.subr.bf16.mxu0 0
  %1648 = vmatpush1.bf16.msra.mxu0 0
  %1649 = vmatprep.subr.bf16.mxu0 0
  %1650 = vmatpush1.bf16.msra.mxu0 0
  %1651 = vmatprep.subr.bf16.mxu0 0
  %1652 = vmatpush1.bf16.msra.mxu0 0
  %1653 = vmatprep.subr.bf16.mxu0 0
  %1654 = vmatpush1.bf16.msra.mxu0 0
  %1655 = vmatprep.subr.bf16.mxu0 0
  %1656 = vmatpush1.bf16.msra.mxu0 0
  %1657 = vmatprep.subr.bf16.mxu0 0
  %1658 = vmatpush1.bf16.msra.mxu0 0
  %1659 = vmatprep.subr.bf16.mxu0 0
  %1660 = vmatpush1.bf16.msra.mxu0 0
  %1661 = vmatprep.subr.bf16.mxu0 0
  %1662 = vmatpush1.bf16.msra.mxu0 0
  %1663 = vmatprep.mubr.bf16.mxu0 0
  %1664 = vmatmul.mubr.bf16.gmra.mrb[0].mxu0 %v1629
  %v1665 = vpop.f32.mrb[0].mxu0
  %v1666 = vadd.f32 0.0, %v1665
  %v1667 = vpop.f32.mrb[0].mxu0
  %v1668 = vpop.f32.mrb[0].mxu0
  %v1669 = vadd.f32 0.0, %v1668
  %v1670 = vpop.f32.mrb[0].mxu0
  %1671 = vdwg.mxu0
  %v1673 = vsel %vm587, %v1622, 0
  %1675 = vmatprep.subr.bf16.mxu0 0
  %1676 = vmatpush1.bf16.msra.mxu0 %v1623
  %1677 = vmatprep.subr.bf16.mxu0 0
  %1678 = vmatpush1.bf16.msra.mxu0 0
  %1679 = vmatprep.subr.bf16.mxu0 0
  %1680 = vmatpush1.bf16.msra.mxu0 0
  %1681 = vmatprep.subr.bf16.mxu0 0
  %1682 = vmatpush1.bf16.msra.mxu0 0
  %1683 = vmatprep.subr.bf16.mxu0 0
  %1684 = vmatpush1.bf16.msra.mxu0 0
  %1685 = vmatprep.subr.bf16.mxu0 0
  %1686 = vmatpush1.bf16.msra.mxu0 0
  %1687 = vmatprep.subr.bf16.mxu0 0
  %1688 = vmatpush1.bf16.msra.mxu0 0
  %1689 = vmatprep.subr.bf16.mxu0 0
  %1690 = vmatpush1.bf16.msra.mxu0 0
  %1691 = vmatprep.subr.bf16.mxu0 0
  %1692 = vmatpush1.bf16.msra.mxu0 0
  %1693 = vmatprep.subr.bf16.mxu0 0
  %1694 = vmatpush1.bf16.msra.mxu0 0
  %1695 = vmatprep.subr.bf16.mxu0 0
  %1696 = vmatpush1.bf16.msra.mxu0 0
  %1697 = vmatprep.subr.bf16.mxu0 0
  %1698 = vmatpush1.bf16.msra.mxu0 0
  %1699 = vmatprep.subr.bf16.mxu0 0
  %1700 = vmatpush1.bf16.msra.mxu0 0
  %1701 = vmatprep.subr.bf16.mxu0 0
  %1702 = vmatpush1.bf16.msra.mxu0 0
  %1703 = vmatprep.subr.bf16.mxu0 0
  %1704 = vmatpush1.bf16.msra.mxu0 0
  %1705 = vmatprep.subr.bf16.mxu0 0
  %1706 = vmatpush1.bf16.msra.mxu0 0
  %1707 = vmatprep.mubr.bf16.mxu0 0
  %1708 = vmatmul.mubr.bf16.gmra.mrb[0].mxu0 %v1673
  %v1709 = vpop.f32.mrb[0].mxu0
  %v1710 = vadd.f32 %v1666, %v1709
  %v1711 = vpop.f32.mrb[0].mxu0
  %v1712 = vpop.f32.mrb[0].mxu0
  %v1713 = vadd.f32 %v1669, %v1712
  %v1714 = vpop.f32.mrb[0].mxu0
  %1715 = vdwg.mxu0
  %v1716 = vmul.f32 %v1433, %v240
  %v1717 = vmul.f32 %v1436, %v241
  %v1718 = vpack.c.bf16 %v1617, %v1616
  %v1719 = vpack.c.bf16 %v1717, %v1716
  %v1721 = vsel %vm587, %v1718, 0
  %1723 = vmatprep.subr.bf16.mxu0 0
  %1724 = vmatpush1.bf16.msra.mxu0 %v1719
  %1725 = vmatprep.subr.bf16.mxu0 0
  %1726 = vmatpush1.bf16.msra.mxu0 0
  %1727 = vmatprep.subr.bf16.mxu0 0
  %1728 = vmatpush1.bf16.msra.mxu0 0
  %1729 = vmatprep.subr.bf16.mxu0 0
  %1730 = vmatpush1.bf16.msra.mxu0 0
  %1731 = vmatprep.subr.bf16.mxu0 0
  %1732 = vmatpush1.bf16.msra.mxu0 0
  %1733 = vmatprep.subr.bf16.mxu0 0
  %1734 = vmatpush1.bf16.msra.mxu0 0
  %1735 = vmatprep.subr.bf16.mxu0 0
  %1736 = vmatpush1.bf16.msra.mxu0 0
  %1737 = vmatprep.subr.bf16.mxu0 0
  %1738 = vmatpush1.bf16.msra.mxu0 0
  %1739 = vmatprep.subr.bf16.mxu0 0
  %1740 = vmatpush1.bf16.msra.mxu0 0
  %1741 = vmatprep.subr.bf16.mxu0 0
  %1742 = vmatpush1.bf16.msra.mxu0 0
  %1743 = vmatprep.subr.bf16.mxu0 0
  %1744 = vmatpush1.bf16.msra.mxu0 0
  %1745 = vmatprep.subr.bf16.mxu0 0
  %1746 = vmatpush1.bf16.msra.mxu0 0
  %1747 = vmatprep.subr.bf16.mxu0 0
  %1748 = vmatpush1.bf16.msra.mxu0 0
  %1749 = vmatprep.subr.bf16.mxu0 0
  %1750 = vmatpush1.bf16.msra.mxu0 0
  %1751 = vmatprep.subr.bf16.mxu0 0
  %1752 = vmatpush1.bf16.msra.mxu0 0
  %1753 = vmatprep.subr.bf16.mxu0 0
  %1754 = vmatpush1.bf16.msra.mxu0 0
  %1755 = vmatprep.mubr.bf16.mxu0 0
  %1756 = vmatmul.mubr.bf16.gmra.mrb[0].mxu0 %v1721
  %v1757 = vpop.f32.mrb[0].mxu0
  %v1758 = vadd.f32 0.0, %v1757
  %v1759 = vpop.f32.mrb[0].mxu0
  %v1760 = vpop.f32.mrb[0].mxu0
  %v1761 = vadd.f32 0.0, %v1760
  %v1762 = vpop.f32.mrb[0].mxu0
  %1763 = vdwg.mxu0
  %v1764 = vadd.f32 %v1710, %v1758
  %v1765 = vadd.f32 %v1713, %v1761
  %v1766 = vmul.f32 %v1433, %v242
  %v1767 = vmul.f32 %v1436, %v243
  %v1768 = vpack.c.bf16 %v1619, %v1618
  %v1769 = vpack.c.bf16 %v1767, %v1766
  %v1771 = vsel %vm587, %v1768, 0
  %1773 = vmatprep.subr.bf16.mxu0 0
  %1774 = vmatpush1.bf16.msra.mxu0 %v1769
  %1775 = vmatprep.subr.bf16.mxu0 0
  %1776 = vmatpush1.bf16.msra.mxu0 0
  %1777 = vmatprep.subr.bf16.mxu0 0
  %1778 = vmatpush1.bf16.msra.mxu0 0
  %1779 = vmatprep.subr.bf16.mxu0 0
  %1780 = vmatpush1.bf16.msra.mxu0 0
  %1781 = vmatprep.subr.bf16.mxu0 0
  %1782 = vmatpush1.bf16.msra.mxu0 0
  %1783 = vmatprep.subr.bf16.mxu0 0
  %1784 = vmatpush1.bf16.msra.mxu0 0
  %1785 = vmatprep.subr.bf16.mxu0 0
  %1786 = vmatpush1.bf16.msra.mxu0 0
  %1787 = vmatprep.subr.bf16.mxu0 0
  %1788 = vmatpush1.bf16.msra.mxu0 0
  %1789 = vmatprep.subr.bf16.mxu0 0
  %1790 = vmatpush1.bf16.msra.mxu0 0
  %1791 = vmatprep.subr.bf16.mxu0 0
  %1792 = vmatpush1.bf16.msra.mxu0 0
  %1793 = vmatprep.subr.bf16.mxu0 0
  %1794 = vmatpush1.bf16.msra.mxu0 0
  %1795 = vmatprep.subr.bf16.mxu0 0
  %1796 = vmatpush1.bf16.msra.mxu0 0
  %1797 = vmatprep.subr.bf16.mxu0 0
  %1798 = vmatpush1.bf16.msra.mxu0 0
  %1799 = vmatprep.subr.bf16.mxu0 0
  %1800 = vmatpush1.bf16.msra.mxu0 0
  %1801 = vmatprep.subr.bf16.mxu0 0
  %1802 = vmatpush1.bf16.msra.mxu0 0
  %1803 = vmatprep.subr.bf16.mxu0 0
  %1804 = vmatpush1.bf16.msra.mxu0 0
  %1805 = vmatprep.mubr.bf16.mxu0 0
  %1806 = vmatmul.mubr.bf16.gmra.mrb[0].mxu0 %v1771
  %v1807 = vpop.f32.mrb[0].mxu0
  %v1808 = vadd.f32 0.0, %v1807
  %v1809 = vpop.f32.mrb[0].mxu0
  %v1810 = vpop.f32.mrb[0].mxu0
  %v1811 = vadd.f32 0.0, %v1810
  %v1812 = vpop.f32.mrb[0].mxu0
  %1813 = vdwg.mxu0
  %v1814 = vadd.f32 %v1764, %v1808
  %v1815 = vadd.f32 %v1765, %v1811
  %s1816 = scalar_lea.vmem %s13, 16
  %v1817 = vld [vmem:[%s1816] sm:$0xf]
  %v1818 = vld [vmem:[%s1816 + $0x4] sm:$0xf]
  %v1819 = vld [vmem:[%s1816 + $0x8] sm:$0xf]
  %v1820 = vld [vmem:[%s1816 + $0xc] sm:$0xf]
  %v1821 = vpack.c.bf16 %v1815, %v1814
  %v1826 = vunpack.c.l.b16 %v1817
  %v1827 = vunpack.c.l.b16 %v1818
  %v1828 = vunpack.c.l.b16 %v1819
  %v1829 = vunpack.c.l.b16 %v1820
  %v1830 = vpack.c.b16 %v1827, %v1826
  %v1831 = vpack.c.b16 %v1829, %v1828
  %v1835 = vsel %vm254, %v1821, 0
  %1837 = vmatprep.subr.bf16.mxu0 0
  %1838 = vmatpush1.bf16.msra.mxu0 %v1830
  %1839 = vmatprep.subr.bf16.mxu0 0
  %1840 = vmatpush1.bf16.msra.mxu0 %v1831
  %1841 = vmatprep.subr.bf16.mxu0 0
  %1842 = vmatpush1.bf16.msra.mxu0 0
  %1843 = vmatprep.subr.bf16.mxu0 0
  %1844 = vmatpush1.bf16.msra.mxu0 0
  %1845 = vmatprep.subr.bf16.mxu0 0
  %1846 = vmatpush1.bf16.msra.mxu0 0
  %1847 = vmatprep.subr.bf16.mxu0 0
  %1848 = vmatpush1.bf16.msra.mxu0 0
  %1849 = vmatprep.subr.bf16.mxu0 0
  %1850 = vmatpush1.bf16.msra.mxu0 0
  %1851 = vmatprep.subr.bf16.mxu0 0
  %1852 = vmatpush1.bf16.msra.mxu0 0
  %1853 = vmatprep.subr.bf16.mxu0 0
  %1854 = vmatpush1.bf16.msra.mxu0 0
  %1855 = vmatprep.subr.bf16.mxu0 0
  %1856 = vmatpush1.bf16.msra.mxu0 0
  %1857 = vmatprep.subr.bf16.mxu0 0
  %1858 = vmatpush1.bf16.msra.mxu0 0
  %1859 = vmatprep.subr.bf16.mxu0 0
  %1860 = vmatpush1.bf16.msra.mxu0 0
  %1861 = vmatprep.subr.bf16.mxu0 0
  %1862 = vmatpush1.bf16.msra.mxu0 0
  %1863 = vmatprep.subr.bf16.mxu0 0
  %1864 = vmatpush1.bf16.msra.mxu0 0
  %1865 = vmatprep.subr.bf16.mxu0 0
  %1866 = vmatpush1.bf16.msra.mxu0 0
  %1867 = vmatprep.subr.bf16.mxu0 0
  %1868 = vmatpush1.bf16.msra.mxu0 0
  %1869 = vmatprep.mubr.bf16.mxu0 0
  %1870 = vmatmul.mubr.bf16.gmra.mrb[0].mxu0 %v1835
  %v1871 = vpop.f32.mrb[0].mxu0
  %v1872 = vadd.f32 0.0, %v1871
  %v1873 = vpop.f32.mrb[0].mxu0
  %v1874 = vpop.f32.mrb[0].mxu0
  %v1875 = vadd.f32 0.0, %v1874
  %v1876 = vpop.f32.mrb[0].mxu0
  %1877 = vdwg.mxu0
  %v1878 = vadd.f32 %v1189, %v1872
  %v1879 = vadd.f32 %v1190, %v1875
  %s1880 = scalar_lea.vmem %s14, 1
  %v1881 = vld [vmem:[%s1880] sm:$0x1]
  %v1883 = vlaneseq
  %v1884 = vshrl.u32 %v1883, 7
  %v1885 = vsub.s32 0, %v1884
  %v1886 = vrot.slane %v1881, %v1885
  %v1888 = vadd.f32 %v1878, %v1886
  %v1889 = vadd.f32 %v1879, %v1886
  %s1890 = scalar_lea.vmem %s15, 1
  %v1891 = vld [vmem:[%s1890] sm:$0x1]
  %s1892 = scalar_lea.vmem %s16, 1
  %v1893 = vld [vmem:[%s1892] sm:$0x1]
  %v1894 = vsel %vm254, %v1888, 0.0
  %1895 = vadd.xlane.f32.xlu0 %v1894
  %v1896 = vpop.xlane.xlu0 %1895
  %v1897 = vsel %vm254, %v1889, 0.0
  %1898 = vadd.xlane.f32.xlu0 %v1897
  %v1899 = vpop.xlane.xlu0 %1898
  %v1900 = vmul.f32 %v1896, %v261
  %v1901 = vmul.f32 %v1899, %v261
  %v1902 = vsub.f32 %v1888, %v1900
  %v1903 = vsub.f32 %v1889, %v1901
  %v1904 = vmul.f32 %v1902, %v1902
  %v1905 = vmul.f32 %v1903, %v1903
  %v1906 = vsel %vm254, %v1904, 0.0
  %1907 = vadd.xlane.f32.xlu0 %v1906
  %v1908 = vpop.xlane.xlu0 %1907
  %v1909 = vsel %vm254, %v1905, 0.0
  %1910 = vadd.xlane.f32.xlu0 %v1909
  %v1911 = vpop.xlane.xlu0 %1910
  %v1912 = vmul.f32 %v1908, %v261
  %v1913 = vmul.f32 %v1911, %v261
  %v1914 = vadd.f32 %v1912, 1e-05
  %v1915 = vadd.f32 %v1913, 1e-05
  %v1916 = vrsqrt.pop %v1914
  %v1917 = vrsqrt.pop %v1915
  %v1918 = vmul.f32 %v1902, %v1916
  %v1919 = vmul.f32 %v1903, %v1917
  %v1921 = vlaneseq
  %v1922 = vshrl.u32 %v1921, 7
  %v1923 = vsub.s32 0, %v1922
  %v1924 = vrot.slane %v1891, %v1923
  %v1926 = vmul.f32 %v1918, %v1924
  %v1927 = vmul.f32 %v1919, %v1924
  %v1929 = vlaneseq
  %v1930 = vshrl.u32 %v1929, 7
  %v1931 = vsub.s32 0, %v1930
  %v1932 = vrot.slane %v1893, %v1931
  %v1934 = vadd.f32 %v1926, %v1932
  %v1935 = vadd.f32 %v1927, %v1932
  %s1936 = scalar_lea.vmem %s17, 16
  %v1937 = vld [vmem:[%s1936] sm:$0xf]
  %v1938 = vld [vmem:[%s1936 + $0x4] sm:$0xf]
  %v1939 = vld [vmem:[%s1936 + $0x8] sm:$0xf]
  %v1940 = vld [vmem:[%s1936 + $0xc] sm:$0xf]
  %v1941 = vpack.c.bf16 %v1935, %v1934
  %s1942 = scalar_lea.vmem %s18, 1
  %v1943 = vld [vmem:[%s1942] sm:$0x1]
  %v1945 = vlaneseq
  %v1946 = vshrl.u32 %v1945, 7
  %v1947 = vsub.s32 0, %v1946
  %v1948 = vrot.slane %v1943, %v1947
  %v1954 = vunpack.c.l.b16 %v1937
  %v1955 = vunpack.c.l.b16 %v1938
  %v1956 = vunpack.c.l.b16 %v1939
  %v1957 = vunpack.c.l.b16 %v1940
  %v1958 = vpack.c.b16 %v1955, %v1954
  %v1959 = vpack.c.b16 %v1957, %v1956
  %v1963 = vsel %vm254, %v1941, 0
  %1965 = vmatprep.subr.bf16.mxu0 0
  %1966 = vmatpush1.bf16.msra.mxu0 %v1958
  %1967 = vmatprep.subr.bf16.mxu0 0
  %1968 = vmatpush1.bf16.msra.mxu0 %v1959
  %1969 = vmatprep.subr.bf16.mxu0 0
  %1970 = vmatpush1.bf16.msra.mxu0 0
  %1971 = vmatprep.subr.bf16.mxu0 0
  %1972 = vmatpush1.bf16.msra.mxu0 0
  %1973 = vmatprep.subr.bf16.mxu0 0
  %1974 = vmatpush1.bf16.msra.mxu0 0
  %1975 = vmatprep.subr.bf16.mxu0 0
  %1976 = vmatpush1.bf16.msra.mxu0 0
  %1977 = vmatprep.subr.bf16.mxu0 0
  %1978 = vmatpush1.bf16.msra.mxu0 0
  %1979 = vmatprep.subr.bf16.mxu0 0
  %1980 = vmatpush1.bf16.msra.mxu0 0
  %1981 = vmatprep.subr.bf16.mxu0 0
  %1982 = vmatpush1.bf16.msra.mxu0 0
  %1983 = vmatprep.subr.bf16.mxu0 0
  %1984 = vmatpush1.bf16.msra.mxu0 0
  %1985 = vmatprep.subr.bf16.mxu0 0
  %1986 = vmatpush1.bf16.msra.mxu0 0
  %1987 = vmatprep.subr.bf16.mxu0 0
  %1988 = vmatpush1.bf16.msra.mxu0 0
  %1989 = vmatprep.subr.bf16.mxu0 0
  %1990 = vmatpush1.bf16.msra.mxu0 0
  %1991 = vmatprep.subr.bf16.mxu0 0
  %1992 = vmatpush1.bf16.msra.mxu0 0
  %1993 = vmatprep.subr.bf16.mxu0 0
  %1994 = vmatpush1.bf16.msra.mxu0 0
  %1995 = vmatprep.subr.bf16.mxu0 0
  %1996 = vmatpush1.bf16.msra.mxu0 0
  %1997 = vmatprep.mubr.bf16.mxu0 0
  %1998 = vmatmul.mubr.bf16.gmra.mrb[0].mxu0 %v1963
  %v1999 = vpop.f32.mrb[0].mxu0
  %v2000 = vadd.f32 %v1948, %v1999
  %v2001 = vpop.f32.mrb[0].mxu0
  %v2002 = vpop.f32.mrb[0].mxu0
  %v2003 = vadd.f32 %v1948, %v2002
  %v2004 = vpop.f32.mrb[0].mxu0
  %2005 = vdwg.mxu0
  %v2006 = vmul.f32 %v2000, 0.5
  %v2007 = vmul.f32 %v2003, 0.5
  %v2008 = vmul.f32 %v2000, 0.044715
  %v2009 = vmul.f32 %v2003, 0.044715
  %v2010 = vmul.f32 %v2008, %v2000
  %v2011 = vmul.f32 %v2009, %v2003
  %v2012 = vmul.f32 %v2010, %v2000
  %v2013 = vmul.f32 %v2011, %v2003
  %v2014 = vadd.f32 %v2000, %v2012
  %v2015 = vadd.f32 %v2003, %v2013
  %v2016 = vmul.f32 %v2014, 0.7978846
  %v2017 = vmul.f32 %v2015, 0.7978846
  %v2018 = vtanh.pop %v2016
  %v2019 = vtanh.pop %v2017
  %v2020 = vadd.f32 %v2018, 1.0
  %v2021 = vadd.f32 %v2019, 1.0
  %v2022 = vmul.f32 %v2006, %v2020
  %v2023 = vmul.f32 %v2007, %v2021
  %s2024 = scalar_lea.vmem %s19, 64
  %v2025 = vld [vmem:[%s2024] sm:$0xf]
  %v2026 = vld [vmem:[%s2024 + $0x4] sm:$0xf]
  %v2027 = vld [vmem:[%s2024 + $0x8] sm:$0xf]
  %v2028 = vld [vmem:[%s2024 + $0xc] sm:$0xf]
  %v2029 = vld [vmem:[%s2024 + $0x10] sm:$0xf]
  %v2030 = vld [vmem:[%s2024 + $0x14] sm:$0xf]
  %v2031 = vld [vmem:[%s2024 + $0x18] sm:$0xf]
  %v2032 = vld [vmem:[%s2024 + $0x1c] sm:$0xf]
  %v2033 = vld [vmem:[%s2024 + $0x20] sm:$0xf]
  %v2034 = vld [vmem:[%s2024 + $0x24] sm:$0xf]
  %v2035 = vld [vmem:[%s2024 + $0x28] sm:$0xf]
  %v2036 = vld [vmem:[%s2024 + $0x2c] sm:$0xf]
  %v2037 = vld [vmem:[%s2024 + $0x30] sm:$0xf]
  %v2038 = vld [vmem:[%s2024 + $0x34] sm:$0xf]
  %v2039 = vld [vmem:[%s2024 + $0x38] sm:$0xf]
  %v2040 = vld [vmem:[%s2024 + $0x3c] sm:$0xf]
  %v2041 = vpack.c.bf16 %v2023, %v2022
  %v2058 = vunpack.c.l.b16 %v2025
  %v2059 = vunpack.c.l.b16 %v2026
  %v2060 = vunpack.c.l.b16 %v2027
  %v2061 = vunpack.c.l.b16 %v2028
  %v2062 = vunpack.c.l.b16 %v2029
  %v2063 = vunpack.c.l.b16 %v2030
  %v2064 = vunpack.c.l.b16 %v2031
  %v2065 = vunpack.c.l.b16 %v2032
  %v2066 = vunpack.c.l.b16 %v2033
  %v2067 = vunpack.c.l.b16 %v2034
  %v2068 = vunpack.c.l.b16 %v2035
  %v2069 = vunpack.c.l.b16 %v2036
  %v2070 = vunpack.c.l.b16 %v2037
  %v2071 = vunpack.c.l.b16 %v2038
  %v2072 = vunpack.c.l.b16 %v2039
  %v2073 = vunpack.c.l.b16 %v2040
  %v2074 = vpack.c.b16 %v2059, %v2058
  %v2075 = vpack.c.b16 %v2061, %v2060
  %v2076 = vpack.c.b16 %v2063, %v2062
  %v2077 = vpack.c.b16 %v2065, %v2064
  %v2078 = vpack.c.b16 %v2067, %v2066
  %v2079 = vpack.c.b16 %v2069, %v2068
  %v2080 = vpack.c.b16 %v2071, %v2070
  %v2081 = vpack.c.b16 %v2073, %v2072
  %2090 = vmatprep.subr.bf16.mxu0 0
  %2091 = vmatpush1.bf16.msra.mxu0 %v2074
  %2092 = vmatprep.subr.bf16.mxu0 0
  %2093 = vmatpush1.bf16.msra.mxu0 %v2075
  %2094 = vmatprep.subr.bf16.mxu0 0
  %2095 = vmatpush1.bf16.msra.mxu0 %v2076
  %2096 = vmatprep.subr.bf16.mxu0 0
  %2097 = vmatpush1.bf16.msra.mxu0 %v2077
  %2098 = vmatprep.subr.bf16.mxu0 0
  %2099 = vmatpush1.bf16.msra.mxu0 %v2078
  %2100 = vmatprep.subr.bf16.mxu0 0
  %2101 = vmatpush1.bf16.msra.mxu0 %v2079
  %2102 = vmatprep.subr.bf16.mxu0 0
  %2103 = vmatpush1.bf16.msra.mxu0 %v2080
  %2104 = vmatprep.subr.bf16.mxu0 0
  %2105 = vmatpush1.bf16.msra.mxu0 %v2081
  %2106 = vmatprep.subr.bf16.mxu0 0
  %2107 = vmatpush1.bf16.msra.mxu0 0
  %2108 = vmatprep.subr.bf16.mxu0 0
  %2109 = vmatpush1.bf16.msra.mxu0 0
  %2110 = vmatprep.subr.bf16.mxu0 0
  %2111 = vmatpush1.bf16.msra.mxu0 0
  %2112 = vmatprep.subr.bf16.mxu0 0
  %2113 = vmatpush1.bf16.msra.mxu0 0
  %2114 = vmatprep.subr.bf16.mxu0 0
  %2115 = vmatpush1.bf16.msra.mxu0 0
  %2116 = vmatprep.subr.bf16.mxu0 0
  %2117 = vmatpush1.bf16.msra.mxu0 0
  %2118 = vmatprep.subr.bf16.mxu0 0
  %2119 = vmatpush1.bf16.msra.mxu0 0
  %2120 = vmatprep.subr.bf16.mxu0 0
  %2121 = vmatpush1.bf16.msra.mxu0 0
  %2122 = vmatprep.mubr.bf16.mxu0 0
  %2123 = vmatmul.mubr.bf16.gmra.mrb[0].mxu0 %v2041
  %v2124 = vpop.f32.mrb[0].mxu0
  %v2125 = vadd.f32 0.0, %v2124
  %v2126 = vpop.f32.mrb[0].mxu0
  %v2127 = vpop.f32.mrb[0].mxu0
  %v2128 = vadd.f32 0.0, %v2127
  %v2129 = vpop.f32.mrb[0].mxu0
  %2130 = vdwg.mxu0
  %v2131 = vadd.f32 %v1888, %v2125
  %v2132 = vadd.f32 %v1889, %v2128
  %s2133 = scalar_lea.vmem %s20, 1
  %v2134 = vld [vmem:[%s2133] sm:$0x1]
  %v2136 = vlaneseq
  %v2137 = vshrl.u32 %v2136, 7
  %v2138 = vsub.s32 0, %v2137
  %v2139 = vrot.slane %v2134, %v2138
  %v2141 = vadd.f32 %v2131, %v2139
  %v2142 = vadd.f32 %v2132, %v2139
  %v2143 = vld [vmem:[%s21] sm:$0x1]
  %v2144 = vld [vmem:[%s22] sm:$0x1]
  %v2145 = vsel %vm254, %v2141, 0.0
  %2146 = vadd.xlane.f32.xlu0 %v2145
  %v2147 = vpop.xlane.xlu0 %2146
  %v2148 = vsel %vm254, %v2142, 0.0
  %2149 = vadd.xlane.f32.xlu0 %v2148
  %v2150 = vpop.xlane.xlu0 %2149
  %v2151 = vmul.f32 %v2147, %v261
  %v2152 = vmul.f32 %v2150, %v261
  %v2153 = vsub.f32 %v2141, %v2151
  %v2154 = vsub.f32 %v2142, %v2152
  %v2155 = vmul.f32 %v2153, %v2153
  %v2156 = vmul.f32 %v2154, %v2154
  %v2157 = vsel %vm254, %v2155, 0.0
  %2158 = vadd.xlane.f32.xlu0 %v2157
  %v2159 = vpop.xlane.xlu0 %2158
  %v2160 = vsel %vm254, %v2156, 0.0
  %2161 = vadd.xlane.f32.xlu0 %v2160
  %v2162 = vpop.xlane.xlu0 %2161
  %v2163 = vmul.f32 %v2159, %v261
  %v2164 = vmul.f32 %v2162, %v261
  %v2165 = vadd.f32 %v2163, 1e-05
  %v2166 = vadd.f32 %v2164, 1e-05
  %v2167 = vrsqrt.pop %v2165
  %v2168 = vrsqrt.pop %v2166
  %v2169 = vmul.f32 %v2153, %v2167
  %v2170 = vmul.f32 %v2154, %v2168
  %v2172 = vlaneseq
  %v2173 = vshrl.u32 %v2172, 7
  %v2174 = vsub.s32 0, %v2173
  %v2175 = vrot.slane %v2143, %v2174
  %v2177 = vmul.f32 %v2169, %v2175
  %v2178 = vmul.f32 %v2170, %v2175
  %v2180 = vlaneseq
  %v2181 = vshrl.u32 %v2180, 7
  %v2182 = vsub.s32 0, %v2181
  %v2183 = vrot.slane %v2144, %v2182
  %v2185 = vadd.f32 %v2177, %v2183
  %v2186 = vadd.f32 %v2178, %v2183
  %v2187 = vld [vmem:[%s23] sm:$0xf]
  %v2188 = vld [vmem:[%s23 + $0x4] sm:$0xf]
  %v2189 = vld [vmem:[%s23 + $0x8] sm:$0xf]
  %v2190 = vld [vmem:[%s23 + $0xc] sm:$0xf]
  %v2191 = vpack.c.bf16 %v2186, %v2185
  %v2192 = vld [vmem:[%s24] sm:$0x1]
  %v2194 = vlaneseq
  %v2195 = vshrl.u32 %v2194, 7
  %v2196 = vsub.s32 0, %v2195
  %v2197 = vrot.slane %v2192, %v2196
  %v2203 = vunpack.c.l.b16 %v2187
  %v2204 = vunpack.c.l.b16 %v2188
  %v2205 = vunpack.c.l.b16 %v2189
  %v2206 = vunpack.c.l.b16 %v2190
  %v2207 = vpack.c.b16 %v2204, %v2203
  %v2208 = vpack.c.b16 %v2206, %v2205
  %v2212 = vsel %vm254, %v2191, 0
  %2214 = vmatprep.subr.bf16.mxu0 0
  %2215 = vmatpush1.bf16.msra.mxu0 %v2207
  %2216 = vmatprep.subr.bf16.mxu0 0
  %2217 = vmatpush1.bf16.msra.mxu0 %v2208
  %2218 = vmatprep.subr.bf16.mxu0 0
  %2219 = vmatpush1.bf16.msra.mxu0 0
  %2220 = vmatprep.subr.bf16.mxu0 0
  %2221 = vmatpush1.bf16.msra.mxu0 0
  %2222 = vmatprep.subr.bf16.mxu0 0
  %2223 = vmatpush1.bf16.msra.mxu0 0
  %2224 = vmatprep.subr.bf16.mxu0 0
  %2225 = vmatpush1.bf16.msra.mxu0 0
  %2226 = vmatprep.subr.bf16.mxu0 0
  %2227 = vmatpush1.bf16.msra.mxu0 0
  %2228 = vmatprep.subr.bf16.mxu0 0
  %2229 = vmatpush1.bf16.msra.mxu0 0
  %2230 = vmatprep.subr.bf16.mxu0 0
  %2231 = vmatpush1.bf16.msra.mxu0 0
  %2232 = vmatprep.subr.bf16.mxu0 0
  %2233 = vmatpush1.bf16.msra.mxu0 0
  %2234 = vmatprep.subr.bf16.mxu0 0
  %2235 = vmatpush1.bf16.msra.mxu0 0
  %2236 = vmatprep.subr.bf16.mxu0 0
  %2237 = vmatpush1.bf16.msra.mxu0 0
  %2238 = vmatprep.subr.bf16.mxu0 0
  %2239 = vmatpush1.bf16.msra.mxu0 0
  %2240 = vmatprep.subr.bf16.mxu0 0
  %2241 = vmatpush1.bf16.msra.mxu0 0
  %2242 = vmatprep.subr.bf16.mxu0 0
  %2243 = vmatpush1.bf16.msra.mxu0 0
  %2244 = vmatprep.subr.bf16.mxu0 0
  %2245 = vmatpush1.bf16.msra.mxu0 0
  %2246 = vmatprep.mubr.bf16.mxu0 0
  %2247 = vmatmul.mubr.bf16.gmra.mrb[0].mxu0 %v2212
  %v2248 = vpop.f32.mrb[0].mxu0
  %v2249 = vadd.f32 %v2197, %v2248
  %v2250 = vpop.f32.mrb[0].mxu0
  %v2251 = vpop.f32.mrb[0].mxu0
  %v2252 = vadd.f32 %v2197, %v2251
  %v2253 = vpop.f32.mrb[0].mxu0
  %2254 = vdwg.mxu0
  %v2255 = vtanh.pop %v2249
  %v2256 = vtanh.pop %v2252
  %v2257 = vld [vmem:[%s25] sm:$0xf]
  %v2258 = vld [vmem:[%s25 + $0x4] sm:$0xf]
  %v2259 = vld [vmem:[%s25 + $0x8] sm:$0xf]
  %v2260 = vld [vmem:[%s25 + $0xc] sm:$0xf]
  %v2261 = vpack.c.bf16 %v2256, %v2255
  %v2262 = vld [vmem:[%s26] sm:$0x1]
  %v2264 = vlaneseq
  %v2265 = vshrl.u32 %v2264, 7
  %v2266 = vsub.s32 0, %v2265
  %v2267 = vrot.slane %v2262, %v2266
  %v2273 = vunpack.c.l.b16 %v2257
  %v2274 = vunpack.c.l.b16 %v2258
  %v2275 = vunpack.c.l.b16 %v2259
  %v2276 = vunpack.c.l.b16 %v2260
  %v2277 = vpack.c.b16 %v2274, %v2273
  %v2278 = vpack.c.b16 %v2276, %v2275
  %v2282 = vsel %vm254, %v2261, 0
  %2284 = vmatprep.subr.bf16.mxu0 0
  %2285 = vmatpush1.bf16.msra.mxu0 %v2277
  %2286 = vmatprep.subr.bf16.mxu0 0
  %2287 = vmatpush1.bf16.msra.mxu0 %v2278
  %2288 = vmatprep.subr.bf16.mxu0 0
  %2289 = vmatpush1.bf16.msra.mxu0 0
  %2290 = vmatprep.subr.bf16.mxu0 0
  %2291 = vmatpush1.bf16.msra.mxu0 0
  %2292 = vmatprep.subr.bf16.mxu0 0
  %2293 = vmatpush1.bf16.msra.mxu0 0
  %2294 = vmatprep.subr.bf16.mxu0 0
  %2295 = vmatpush1.bf16.msra.mxu0 0
  %2296 = vmatprep.subr.bf16.mxu0 0
  %2297 = vmatpush1.bf16.msra.mxu0 0
  %2298 = vmatprep.subr.bf16.mxu0 0
  %2299 = vmatpush1.bf16.msra.mxu0 0
  %2300 = vmatprep.subr.bf16.mxu0 0
  %2301 = vmatpush1.bf16.msra.mxu0 0
  %2302 = vmatprep.subr.bf16.mxu0 0
  %2303 = vmatpush1.bf16.msra.mxu0 0
  %2304 = vmatprep.subr.bf16.mxu0 0
  %2305 = vmatpush1.bf16.msra.mxu0 0
  %2306 = vmatprep.subr.bf16.mxu0 0
  %2307 = vmatpush1.bf16.msra.mxu0 0
  %2308 = vmatprep.subr.bf16.mxu0 0
  %2309 = vmatpush1.bf16.msra.mxu0 0
  %2310 = vmatprep.subr.bf16.mxu0 0
  %2311 = vmatpush1.bf16.msra.mxu0 0
  %2312 = vmatprep.subr.bf16.mxu0 0
  %2313 = vmatpush1.bf16.msra.mxu0 0
  %2314 = vmatprep.subr.bf16.mxu0 0
  %2315 = vmatpush1.bf16.msra.mxu0 0
  %2316 = vmatprep.mubr.bf16.mxu0 0
  %2317 = vmatmul.mubr.bf16.gmra.mrb[0].mxu0 %v2282
  %v2318 = vpop.f32.mrb[0].mxu0
  %v2319 = vadd.f32 %v2267, %v2318
  %v2320 = vpop.f32.mrb[0].mxu0
  %v2321 = vpop.f32.mrb[0].mxu0
  %v2322 = vadd.f32 %v2267, %v2321
  %v2323 = vpop.f32.mrb[0].mxu0
  %2324 = vdwg.mxu0
  %2325 = vst.msk [vmem:[%s27] sm:$0xff] %vm587, %v2319
  %2326 = vst.msk [vmem:[%s27 + $0x8] sm:$0xff] %vm587, %v2322
  // Predicated region
  $region110: #{vit_forward.1} parent=0 // pred_check
    _
  $region111: #{vit_forward.1} parent=0 // pred_check_branch
    %2328 = sbr.rel (0) target = $region113
  $region112: #{vit_forward.1} parent=0 // pred_region
    _
  $region113: #{vit_forward.1} parent=0 // pred_fallthru
    _
  // Predicated region
  $region114: #{vit_forward.1} parent=0 // pred_check
    _
  $region115: #{vit_forward.1} parent=0 // pred_check_branch
    %2330 = sbr.rel (0) target = $region117
  $region116: #{vit_forward.1} parent=0 // pred_region
    _
  $region117: #{vit_forward.1} parent=0 // pred_fallthru
    _

</llo_original>
